<compile_context>
chip_gen: v5e
topology: v5e:2x2
jax: 0.10.0
libtpu: 0.0.40
codegen_flags: <defaults>
</compile_context>

<pallas_src>
import functools

import jax
import jax.numpy as jnp
from jax.experimental import pallas as pl
from jax.experimental.pallas import tpu as pltpu

LANES = 128   # lane-pad every channel dimension to this


# ----------------------------------------------------------------------------
# Fused Pallas kernel: embedding lookup + 4x (conv1d k=3 pad=1 + bias + ReLU).
# One grid step == one batch element; activations are (L, 128) channels-last
# and never leave VMEM / vregs.
# ----------------------------------------------------------------------------
def _fused_ae_kernel(tok_ref, emb_ref,
                     w1_ref, b1_ref, w2_ref, b2_ref,
                     w3_ref, b3_ref, w4_ref, b4_ref,
                     o_ref):
    # tok_ref : (L, 1)     int32 token ids of this batch element
    # emb_ref : (Vp, CP)   bf16  row/lane zero-padded embedding table (resident)
    # w*_ref  : (3*CP, CP) bf16  im2col-packed conv taps ([tap0; tap1; tap2] along K)
    # b*_ref  : (1, CP)    f32   zero-padded bias
    # o_ref   : (L, CP)    f32   lane-dense output (real channels live in [:, :out_dim])
    L, CP = o_ref.shape
    Vp = emb_ref.shape[0]

    # Edge masks computed in-kernel (L is a block constant): row 0 has no left neighbour,
    # row L-1 has no right neighbour -> exactly where the sublane rolls wrap around.
    row = jax.lax.broadcasted_iota(jnp.int32, (L, 1), 0)
    lmask = (row != 0).astype(jnp.float32)
    rmask = (row != L - 1).astype(jnp.float32)

    # ---- embedding gather as a one-hot matmul (bf16 MXU, f32 accumulate) ----
    # TODO(synk): for realistic vocab sizes switch to PrefetchScalarGridSpec +
    # pl.Element row-gather on the embedding table instead of the O(L*Vp) one-hot.
    tok = tok_ref[...]                                               # (L, 1) int32
    vocab_ids = jax.lax.broadcasted_iota(jnp.int32, (L, Vp), 1)      # (L, Vp)
    onehot = (vocab_ids == tok).astype(jnp.bfloat16)                 # (L, Vp)
    h = jnp.dot(onehot, emb_ref[...], preferred_element_type=jnp.float32)  # (L, CP) f32

    def conv_relu(x, w_ref, b_ref):
        # x: (L, CP) f32.  Neighbour rows via XLU sublane rolls; masks zero the
        # wrapped rows, which is exactly Conv1d padding=1 inside this batch element.
        x_prev = pltpu.roll(x, 1, axis=0) * lmask
        x_next = pltpu.roll(x, L - 1, axis=0) * rmask
        # Fused K=3*CP im2col dot (one MXU push per layer).
        # TODO(synk): on v7x (MRB in-place accumulate) three K=CP dots avoid the concat.
        lhs = jnp.concatenate([x_prev, x, x_next], axis=-1).astype(jnp.bfloat16)
        acc = jnp.dot(lhs, w_ref[...], preferred_element_type=jnp.float32)
        return jnp.maximum(acc + b_ref[...], 0.0)                    # bias + ReLU in f32

    h = conv_relu(h, w1_ref, b1_ref)   # encoder Conv1d + ReLU
    h = conv_relu(h, w2_ref, b2_ref)   # encoder Conv1d + ReLU
    h = conv_relu(h, w3_ref, b3_ref)   # decoder ConvTranspose1d (as flipped conv) + ReLU
    h = conv_relu(h, w4_ref, b4_ref)   # decoder ConvTranspose1d (as flipped conv) + ReLU

    o_ref[...] = h.astype(o_ref.dtype)


# ----------------------------------------------------------------------------
# Wrapper: single fused pallas_call, tokens -> (B, L, max_seq_length)
# ----------------------------------------------------------------------------
def autoencoder_cnn_forward(tokens, packed, *, out_dim):
    """tokens: (B, L) int32 -> (B, L, out_dim) f32 (same layout as the torch output)."""
    B, L = tokens.shape
    assert L % 8 == 0, "sequence length must be sublane-aligned (pad L to a multiple of 8)"
    N = B * L
    tok2d = tokens.reshape(N, 1).astype(jnp.int32)
    Vp, CP = packed["emb"].shape

    const_spec = lambda shape: pl.BlockSpec(shape, lambda b: (0, 0))  # VMEM-resident params

    out_pad = pl.pallas_call(
        _fused_ae_kernel,
        out_shape=jax.ShapeDtypeStruct((N, CP), jnp.float32),
        grid=(B,),
        in_specs=[
            pl.BlockSpec((L, 1), lambda b: (b, 0)),        # this batch element's token ids
            const_spec((Vp, CP)),                           # embedding table
            const_spec((3 * CP, CP)), const_spec((1, CP)),  # w1, b1
            const_spec((3 * CP, CP)), const_spec((1, CP)),  # w2, b2
            const_spec((3 * CP, CP)), const_spec((1, CP)),  # w3, b3
            const_spec((3 * CP, CP)), const_spec((1, CP)),  # w4, b4
        ],
        out_specs=pl.BlockSpec((L, CP), lambda b: (b, 0)),
        compiler_params=pltpu.CompilerParams(
            dimension_semantics=("parallel",),              # megacore / v7x 2-TC sharding
            vmem_limit_bytes=32 * 1024 * 1024,
        ),
    )(tok2d, packed["emb"],
      packed["w1"], packed["b1"], packed["w2"], packed["b2"],
      packed["w3"], packed["b3"], packed["w4"], packed["b4"])

    # Lane-dense kernel output; strip channel padding and restore (B, L, C) shape.
    return out_pad.reshape(B, L, CP)[:, :, :out_dim]


# ----------------------------------------------------------------------------
# Weight-layout conversion (PyTorch conventions -> kernel tap layout) + packing
# ----------------------------------------------------------------------------
def conv_weight_to_taps(w_torch):
    # nn.Conv1d weight (Cout, Cin, 3) -> (3, Cin, Cout); tap j applies to x[t-1+j].
    return jnp.transpose(w_torch, (2, 1, 0))


def convT_weight_to_taps(w_torch):
    # nn.ConvTranspose1d weight (Cin, Cout, 3); stride=1, pad=1, k=3 transpose conv ==
    # conv with tap-flipped kernel: taps[j][i, o] = w[i, o, 2 - j].
    # TODO(synk): exact for stride=1/pad=1/k=3 only; torch-parity not exercised in-script.
    return jnp.transpose(w_torch[:, :, ::-1], (2, 0, 1))


def _pack_conv(w_taps, bias):
    # (3, Cin, Cout) taps -> zero-padded bf16 (3*LANES, LANES) im2col weight;
    # (Cout,) -> f32 (1, LANES) bias (epilogue stays f32).
    k, cin, cout = w_taps.shape
    w_pad = jnp.zeros((k, LANES, LANES), jnp.float32).at[:, :cin, :cout].set(w_taps)
    b_pad = jnp.zeros((1, LANES), jnp.float32).at[0, :cout].set(bias)
    return w_pad.reshape(k * LANES, LANES).astype(jnp.bfloat16), b_pad


def pack_params(params):
    emb = params["embedding"]
    v, e = emb.shape
    v_pad = ((v + LANES - 1) // LANES) * LANES   # MXU-tile-aligned K for the one-hot gather
    packed = {"emb": jnp.zeros((v_pad, LANES), jnp.float32)
                        .at[:v, :e].set(emb).astype(jnp.bfloat16)}
    for i in (1, 2, 3, 4):
        packed[f"w{i}"], packed[f"b{i}"] = _pack_conv(params[f"w{i}"], params[f"b{i}"])
    return packed


# ----------------------------------------------------------------------------
# Pure-JAX f32 reference (unpadded tap params) for correctness checking
# ----------------------------------------------------------------------------
def _conv1d_relu_ref(x, w_taps, bias):
    L = x.shape[1]
    x_pad = jnp.pad(x, ((0, 0), (1, 1), (0, 0)))
    y = (jnp.einsum("blc,cd->bld", x_pad[:, 0:L], w_taps[0])
         + jnp.einsum("blc,cd->bld", x_pad[:, 1:L + 1], w_taps[1])
         + jnp.einsum("blc,cd->bld", x_pad[:, 2:L + 2], w_taps[2])
         + bias)
    return jnp.maximum(y, 0.0)


def autoencoder_cnn_forward_ref(tokens, params):
    h = jnp.take(params["embedding"], tokens, axis=0)          # (B, L, E)
    h = _conv1d_relu_ref(h, params["w1"], params["b1"])
    h = _conv1d_relu_ref(h, params["w2"], params["b2"])
    h = _conv1d_relu_ref(h, params["w3"], params["b3"])
    h = _conv1d_relu_ref(h, params["w4"], params["b4"])
    return h


# ----------------------------------------------------------------------------
# Deterministic synthetic parameters (PyTorch-shaped, then converted to taps)
# ----------------------------------------------------------------------------
def init_params(key, vocab_size, embed_dim, hidden_dim, max_seq_length):
    ks = jax.random.split(key, 9)
    f32 = jnp.float32
    emb = jax.random.normal(ks[0], (vocab_size, embed_dim), f32) * 0.1
    w1_t = jax.random.normal(ks[1], (hidden_dim, embed_dim, 3), f32) * 0.1          # Conv1d
    b1 = jax.random.normal(ks[2], (hidden_dim,), f32) * 0.1
    w2_t = jax.random.normal(ks[3], (hidden_dim // 2, hidden_dim, 3), f32) * 0.1    # Conv1d
    b2 = jax.random.normal(ks[4], (hidden_dim // 2,), f32) * 0.1
    w3_t = jax.random.normal(ks[5], (hidden_dim // 2, hidden_dim, 3), f32) * 0.1    # ConvTranspose1d
    b3 = jax.random.normal(ks[6], (hidden_dim,), f32) * 0.1
    w4_t = jax.random.normal(ks[7], (hidden_dim, max_seq_length, 3), f32) * 0.1     # ConvTranspose1d
    b4 = jax.random.normal(ks[8], (max_seq_length,), f32) * 0.1
    return {
        "embedding": emb,
        "w1": conv_weight_to_taps(w1_t), "b1": b1,
        "w2": conv_weight_to_taps(w2_t), "b2": b2,
        "w3": convT_weight_to_taps(w3_t), "b3": b3,
        "w4": convT_weight_to_taps(w4_t), "b4": b4,
    }


if __name__ == "__main__":
    vocab_size, embed_dim, hidden_dim, max_seq_length = 50, 16, 32, 8
    B, L = 2, max_seq_length

    key = jax.random.PRNGKey(0)
    pkey, tkey = jax.random.split(key)
    params = init_params(pkey, vocab_size, embed_dim, hidden_dim, max_seq_length)
    packed = pack_params(params)
    tokens = jax.random.randint(tkey, (B, L), 0, vocab_size, dtype=jnp.int32)

    fwd = jax.jit(functools.partial(autoencoder_cnn_forward, out_dim=max_seq_length))
    out = jax.block_until_ready(fwd(tokens, packed))

    ref = autoencoder_cnn_forward_ref(tokens, params)
    assert out.shape == (B, L, max_seq_length), out.shape
    # Kernel runs bf16 on the MXU (f32 accumulate/epilogue); compare to the f32 reference
    # with bf16-appropriate tolerances.
    assert jnp.allclose(out, ref, atol=5e-2, rtol=5e-2), float(jnp.max(jnp.abs(out - ref)))

    print("KERNEL_OK")
</pallas_src>

<mosaic_0001>
module attributes {stable_mosaic.version = 11 : i64} {
  func.func @_fused_ae_kernel(%arg0: i32, %arg1: memref<8x1xi32, #tpu.memory_space<vmem>>, %arg2: memref<128x128xbf16, #tpu.memory_space<vmem>>, %arg3: memref<384x128xbf16, #tpu.memory_space<vmem>>, %arg4: memref<1x128xf32, #tpu.memory_space<vmem>>, %arg5: memref<384x128xbf16, #tpu.memory_space<vmem>>, %arg6: memref<1x128xf32, #tpu.memory_space<vmem>>, %arg7: memref<384x128xbf16, #tpu.memory_space<vmem>>, %arg8: memref<1x128xf32, #tpu.memory_space<vmem>>, %arg9: memref<384x128xbf16, #tpu.memory_space<vmem>>, %arg10: memref<1x128xf32, #tpu.memory_space<vmem>>, %arg11: memref<8x128xf32, #tpu.memory_space<vmem>>) attributes {dimension_semantics = [#tpu.dimension_semantics<parallel>], iteration_bounds = array<i64: 2>, scalar_prefetch = 0 : i64, scratch_operands = 0 : i64, tpu.core_type = #tpu.core_type<tc>, window_params = [{transform_indices = @transform_0, window_bounds = array<i64: 8, 1>}, {pipeline_mode = #tpu.pipeline_mode<synchronous>, transform_indices = @transform_1, window_bounds = array<i64: 128, 128>}, {pipeline_mode = #tpu.pipeline_mode<synchronous>, transform_indices = @transform_2, window_bounds = array<i64: 384, 128>}, {pipeline_mode = #tpu.pipeline_mode<synchronous>, transform_indices = @transform_3, window_bounds = array<i64: 1, 128>}, {pipeline_mode = #tpu.pipeline_mode<synchronous>, transform_indices = @transform_4, window_bounds = array<i64: 384, 128>}, {pipeline_mode = #tpu.pipeline_mode<synchronous>, transform_indices = @transform_5, window_bounds = array<i64: 1, 128>}, {pipeline_mode = #tpu.pipeline_mode<synchronous>, transform_indices = @transform_6, window_bounds = array<i64: 384, 128>}, {pipeline_mode = #tpu.pipeline_mode<synchronous>, transform_indices = @transform_7, window_bounds = array<i64: 1, 128>}, {pipeline_mode = #tpu.pipeline_mode<synchronous>, transform_indices = @transform_8, window_bounds = array<i64: 384, 128>}, {pipeline_mode = #tpu.pipeline_mode<synchronous>, transform_indices = @transform_9, window_bounds = array<i64: 1, 128>}, {transform_indices = @transform_10, window_bounds = array<i64: 8, 128>}]} {
    %0 = tpu.iota {dimensions = array<i32: 0>} : vector<8x1xi32>
    %c0_i32 = arith.constant 0 : i32
    %1 = vector.broadcast %c0_i32 : i32 to vector<8x1xi32>
    %2 = arith.cmpi ne, %0, %1 : vector<8x1xi32>
    %3 = arith.extui %2 : vector<8x1xi1> to vector<8x1xi32>
    %4 = arith.sitofp %3 : vector<8x1xi32> to vector<8x1xf32>
    %c7_i32 = arith.constant 7 : i32
    %5 = vector.broadcast %c7_i32 : i32 to vector<8x1xi32>
    %6 = arith.cmpi ne, %0, %5 : vector<8x1xi32>
    %7 = arith.extui %6 : vector<8x1xi1> to vector<8x1xi32>
    %8 = arith.sitofp %7 : vector<8x1xi32> to vector<8x1xf32>
    %c0 = arith.constant 0 : index
    %c0_0 = arith.constant 0 : index
    %9 = vector.load %arg1[%c0, %c0_0] : memref<8x1xi32, #tpu.memory_space<vmem>>, vector<8x1xi32>
    %10 = tpu.iota {dimensions = array<i32: 1>} : vector<8x128xi32>
    %11 = vector.broadcast %9 : vector<8x1xi32> to vector<8x128xi32>
    %12 = arith.cmpi eq, %10, %11 : vector<8x128xi32>
    %13 = arith.extui %12 : vector<8x128xi1> to vector<8x128xi32>
    %14 = arith.sitofp %13 : vector<8x128xi32> to vector<8x128xf32>
    %15 = arith.truncf %14 : vector<8x128xf32> to vector<8x128xbf16>
    %c0_1 = arith.constant 0 : index
    %c0_2 = arith.constant 0 : index
    %16 = vector.load %arg2[%c0_1, %c0_2] : memref<128x128xbf16, #tpu.memory_space<vmem>>, vector<128x128xbf16>
    %cst = arith.constant dense<0.000000e+00> : vector<8x128xf32>
    %17 = tpu.matmul %15, %16, %cst {dimension_numbers = #tpu.dot_dimension_numbers<[1], [0], [0], [1], [0, 0, 1, 1], [], []>} : vector<8x128xbf16>, vector<128x128xbf16>, vector<8x128xf32> -> vector<8x128xf32>
    %c1_i32 = arith.constant 1 : i32
    %18 = tpu.dynamic_rotate %17 by %c1_i32 dim 0 : vector<8x128xf32>, i32 -> vector<8x128xf32>
    %19 = vector.broadcast %4 : vector<8x1xf32> to vector<8x128xf32>
    %20 = arith.mulf %18, %19 : vector<8x128xf32>
    %c7_i32_3 = arith.constant 7 : i32
    %21 = tpu.dynamic_rotate %17 by %c7_i32_3 dim 0 : vector<8x128xf32>, i32 -> vector<8x128xf32>
    %22 = vector.broadcast %8 : vector<8x1xf32> to vector<8x128xf32>
    %23 = arith.mulf %21, %22 : vector<8x128xf32>
    %24 = tpu.concatenate %20, %17, %23 in 1 : vector<8x128xf32>, vector<8x128xf32>, vector<8x128xf32> -> vector<8x384xf32>
    %25 = arith.truncf %24 : vector<8x384xf32> to vector<8x384xbf16>
    %c0_4 = arith.constant 0 : index
    %c0_5 = arith.constant 0 : index
    %26 = vector.load %arg3[%c0_4, %c0_5] : memref<384x128xbf16, #tpu.memory_space<vmem>>, vector<384x128xbf16>
    %cst_6 = arith.constant dense<0.000000e+00> : vector<8x128xf32>
    %27 = tpu.matmul %25, %26, %cst_6 {dimension_numbers = #tpu.dot_dimension_numbers<[1], [0], [0], [1], [0, 0, 1, 1], [], []>} : vector<8x384xbf16>, vector<384x128xbf16>, vector<8x128xf32> -> vector<8x128xf32>
    %c0_7 = arith.constant 0 : index
    %c0_8 = arith.constant 0 : index
    %28 = vector.load %arg4[%c0_7, %c0_8] : memref<1x128xf32, #tpu.memory_space<vmem>>, vector<1x128xf32>
    %29 = vector.broadcast %28 : vector<1x128xf32> to vector<8x128xf32>
    %30 = arith.addf %27, %29 : vector<8x128xf32>
    %cst_9 = arith.constant 0.000000e+00 : f32
    %31 = vector.broadcast %cst_9 : f32 to vector<8x128xf32>
    %32 = arith.maximumf %30, %31 : vector<8x128xf32>
    %c1_i32_10 = arith.constant 1 : i32
    %33 = tpu.dynamic_rotate %32 by %c1_i32_10 dim 0 : vector<8x128xf32>, i32 -> vector<8x128xf32>
    %34 = vector.broadcast %4 : vector<8x1xf32> to vector<8x128xf32>
    %35 = arith.mulf %33, %34 : vector<8x128xf32>
    %c7_i32_11 = arith.constant 7 : i32
    %36 = tpu.dynamic_rotate %32 by %c7_i32_11 dim 0 : vector<8x128xf32>, i32 -> vector<8x128xf32>
    %37 = vector.broadcast %8 : vector<8x1xf32> to vector<8x128xf32>
    %38 = arith.mulf %36, %37 : vector<8x128xf32>
    %39 = tpu.concatenate %35, %32, %38 in 1 : vector<8x128xf32>, vector<8x128xf32>, vector<8x128xf32> -> vector<8x384xf32>
    %40 = arith.truncf %39 : vector<8x384xf32> to vector<8x384xbf16>
    %c0_12 = arith.constant 0 : index
    %c0_13 = arith.constant 0 : index
    %41 = vector.load %arg5[%c0_12, %c0_13] : memref<384x128xbf16, #tpu.memory_space<vmem>>, vector<384x128xbf16>
    %cst_14 = arith.constant dense<0.000000e+00> : vector<8x128xf32>
    %42 = tpu.matmul %40, %41, %cst_14 {dimension_numbers = #tpu.dot_dimension_numbers<[1], [0], [0], [1], [0, 0, 1, 1], [], []>} : vector<8x384xbf16>, vector<384x128xbf16>, vector<8x128xf32> -> vector<8x128xf32>
    %c0_15 = arith.constant 0 : index
    %c0_16 = arith.constant 0 : index
    %43 = vector.load %arg6[%c0_15, %c0_16] : memref<1x128xf32, #tpu.memory_space<vmem>>, vector<1x128xf32>
    %44 = vector.broadcast %43 : vector<1x128xf32> to vector<8x128xf32>
    %45 = arith.addf %42, %44 : vector<8x128xf32>
    %cst_17 = arith.constant 0.000000e+00 : f32
    %46 = vector.broadcast %cst_17 : f32 to vector<8x128xf32>
    %47 = arith.maximumf %45, %46 : vector<8x128xf32>
    %c1_i32_18 = arith.constant 1 : i32
    %48 = tpu.dynamic_rotate %47 by %c1_i32_18 dim 0 : vector<8x128xf32>, i32 -> vector<8x128xf32>
    %49 = vector.broadcast %4 : vector<8x1xf32> to vector<8x128xf32>
    %50 = arith.mulf %48, %49 : vector<8x128xf32>
    %c7_i32_19 = arith.constant 7 : i32
    %51 = tpu.dynamic_rotate %47 by %c7_i32_19 dim 0 : vector<8x128xf32>, i32 -> vector<8x128xf32>
    %52 = vector.broadcast %8 : vector<8x1xf32> to vector<8x128xf32>
    %53 = arith.mulf %51, %52 : vector<8x128xf32>
    %54 = tpu.concatenate %50, %47, %53 in 1 : vector<8x128xf32>, vector<8x128xf32>, vector<8x128xf32> -> vector<8x384xf32>
    %55 = arith.truncf %54 : vector<8x384xf32> to vector<8x384xbf16>
    %c0_20 = arith.constant 0 : index
    %c0_21 = arith.constant 0 : index
    %56 = vector.load %arg7[%c0_20, %c0_21] : memref<384x128xbf16, #tpu.memory_space<vmem>>, vector<384x128xbf16>
    %cst_22 = arith.constant dense<0.000000e+00> : vector<8x128xf32>
    %57 = tpu.matmul %55, %56, %cst_22 {dimension_numbers = #tpu.dot_dimension_numbers<[1], [0], [0], [1], [0, 0, 1, 1], [], []>} : vector<8x384xbf16>, vector<384x128xbf16>, vector<8x128xf32> -> vector<8x128xf32>
    %c0_23 = arith.constant 0 : index
    %c0_24 = arith.constant 0 : index
    %58 = vector.load %arg8[%c0_23, %c0_24] : memref<1x128xf32, #tpu.memory_space<vmem>>, vector<1x128xf32>
    %59 = vector.broadcast %58 : vector<1x128xf32> to vector<8x128xf32>
    %60 = arith.addf %57, %59 : vector<8x128xf32>
    %cst_25 = arith.constant 0.000000e+00 : f32
    %61 = vector.broadcast %cst_25 : f32 to vector<8x128xf32>
    %62 = arith.maximumf %60, %61 : vector<8x128xf32>
    %c1_i32_26 = arith.constant 1 : i32
    %63 = tpu.dynamic_rotate %62 by %c1_i32_26 dim 0 : vector<8x128xf32>, i32 -> vector<8x128xf32>
    %64 = vector.broadcast %4 : vector<8x1xf32> to vector<8x128xf32>
    %65 = arith.mulf %63, %64 : vector<8x128xf32>
    %c7_i32_27 = arith.constant 7 : i32
    %66 = tpu.dynamic_rotate %62 by %c7_i32_27 dim 0 : vector<8x128xf32>, i32 -> vector<8x128xf32>
    %67 = vector.broadcast %8 : vector<8x1xf32> to vector<8x128xf32>
    %68 = arith.mulf %66, %67 : vector<8x128xf32>
    %69 = tpu.concatenate %65, %62, %68 in 1 : vector<8x128xf32>, vector<8x128xf32>, vector<8x128xf32> -> vector<8x384xf32>
    %70 = arith.truncf %69 : vector<8x384xf32> to vector<8x384xbf16>
    %c0_28 = arith.constant 0 : index
    %c0_29 = arith.constant 0 : index
    %71 = vector.load %arg9[%c0_28, %c0_29] : memref<384x128xbf16, #tpu.memory_space<vmem>>, vector<384x128xbf16>
    %cst_30 = arith.constant dense<0.000000e+00> : vector<8x128xf32>
    %72 = tpu.matmul %70, %71, %cst_30 {dimension_numbers = #tpu.dot_dimension_numbers<[1], [0], [0], [1], [0, 0, 1, 1], [], []>} : vector<8x384xbf16>, vector<384x128xbf16>, vector<8x128xf32> -> vector<8x128xf32>
    %c0_31 = arith.constant 0 : index
    %c0_32 = arith.constant 0 : index
    %73 = vector.load %arg10[%c0_31, %c0_32] : memref<1x128xf32, #tpu.memory_space<vmem>>, vector<1x128xf32>
    %74 = vector.broadcast %73 : vector<1x128xf32> to vector<8x128xf32>
    %75 = arith.addf %72, %74 : vector<8x128xf32>
    %cst_33 = arith.constant 0.000000e+00 : f32
    %76 = vector.broadcast %cst_33 : f32 to vector<8x128xf32>
    %77 = arith.maximumf %75, %76 : vector<8x128xf32>
    %c0_34 = arith.constant 0 : index
    %c0_35 = arith.constant 0 : index
    %78 = vector.load %arg11[%c0_34, %c0_35] : memref<8x128xf32, #tpu.memory_space<vmem>>, vector<8x128xf32>
    tpu.vector_store %arg11[%c0_34, %c0_35], %77 {strides = array<i32>} : memref<8x128xf32, #tpu.memory_space<vmem>>, vector<8x128xf32>,
    return
  }
  func.func @transform_0(%arg0: i32) -> (i32, i32) {
    %c0_i32 = arith.constant 0 : i32
    %c0_i32_0 = arith.constant 0 : i32
    return %arg0, %c0_i32 : i32, i32
  }
  func.func @transform_1(%arg0: i32) -> (i32, i32) {
    %c0_i32 = arith.constant 0 : i32
    %c0_i32_0 = arith.constant 0 : i32
    %c0_i32_1 = arith.constant 0 : i32
    return %c0_i32, %c0_i32_0 : i32, i32
  }
  func.func @transform_2(%arg0: i32) -> (i32, i32) {
    %c0_i32 = arith.constant 0 : i32
    %c0_i32_0 = arith.constant 0 : i32
    %c0_i32_1 = arith.constant 0 : i32
    return %c0_i32, %c0_i32_0 : i32, i32
  }
  func.func @transform_3(%arg0: i32) -> (i32, i32) {
    %c0_i32 = arith.constant 0 : i32
    %c0_i32_0 = arith.constant 0 : i32
    %c0_i32_1 = arith.constant 0 : i32
    return %c0_i32, %c0_i32_0 : i32, i32
  }
  func.func @transform_4(%arg0: i32) -> (i32, i32) {
    %c0_i32 = arith.constant 0 : i32
    %c0_i32_0 = arith.constant 0 : i32
    %c0_i32_1 = arith.constant 0 : i32
    return %c0_i32, %c0_i32_0 : i32, i32
  }
  func.func @transform_5(%arg0: i32) -> (i32, i32) {
    %c0_i32 = arith.constant 0 : i32
    %c0_i32_0 = arith.constant 0 : i32
    %c0_i32_1 = arith.constant 0 : i32
    return %c0_i32, %c0_i32_0 : i32, i32
  }
  func.func @transform_6(%arg0: i32) -> (i32, i32) {
    %c0_i32 = arith.constant 0 : i32
    %c0_i32_0 = arith.constant 0 : i32
    %c0_i32_1 = arith.constant 0 : i32
    return %c0_i32, %c0_i32_0 : i32, i32
  }
  func.func @transform_7(%arg0: i32) -> (i32, i32) {
    %c0_i32 = arith.constant 0 : i32
    %c0_i32_0 = arith.constant 0 : i32
    %c0_i32_1 = arith.constant 0 : i32
    return %c0_i32, %c0_i32_0 : i32, i32
  }
  func.func @transform_8(%arg0: i32) -> (i32, i32) {
    %c0_i32 = arith.constant 0 : i32
    %c0_i32_0 = arith.constant 0 : i32
    %c0_i32_1 = arith.constant 0 : i32
    return %c0_i32, %c0_i32_0 : i32, i32
  }
  func.func @transform_9(%arg0: i32) -> (i32, i32) {
    %c0_i32 = arith.constant 0 : i32
    %c0_i32_0 = arith.constant 0 : i32
    %c0_i32_1 = arith.constant 0 : i32
    return %c0_i32, %c0_i32_0 : i32, i32
  }
  func.func @transform_10(%arg0: i32) -> (i32, i32) {
    %c0_i32 = arith.constant 0 : i32
    %c0_i32_0 = arith.constant 0 : i32
    return %arg0, %c0_i32 : i32, i32
  }
}

</mosaic_0001>

<llo_original>
// kernel: autoencoder_cnn_forward.1
$region0: #{autoencoder_cnn_forward.1}
  #allocation0 [shape = 'u32[]', space=smem, size = 0x4, offset = 0x4, fixed_abs, tag = 'smem constant byte address 0x4 - core index']
  #allocation1 [shape = 'u32[72,128]{1,0:T(1,128)}', space=vmem, size = 0x9000, scoped, tag = 'internal scratch']
  %s0 = inlined_call_operand.vmem [shape: s32[16,1], index: 0, kind: input, shape index: {}]
  %s1 = inlined_call_operand.hbm [shape: bf16[128,128], index: 1, kind: input, shape index: {}]
  %s2 = inlined_call_operand.hbm [shape: bf16[384,128], index: 2, kind: input, shape index: {}]
  %s3 = inlined_call_operand.vmem [shape: f32[1,128], index: 3, kind: input, shape index: {}]
  %s4 = inlined_call_operand.hbm [shape: bf16[384,128], index: 4, kind: input, shape index: {}]
  %s5 = inlined_call_operand.vmem [shape: f32[1,128], index: 5, kind: input, shape index: {}]
  %s6 = inlined_call_operand.hbm [shape: bf16[384,128], index: 6, kind: input, shape index: {}]
  %s7 = inlined_call_operand.vmem [shape: f32[1,128], index: 7, kind: input, shape index: {}]
  %s8 = inlined_call_operand.hbm [shape: bf16[384,128], index: 8, kind: input, shape index: {}]
  %s9 = inlined_call_operand.vmem [shape: f32[1,128], index: 9, kind: input, shape index: {}]
  %s10 = inlined_call_operand.hbm [shape: f32[16,128], index: 10, kind: output, shape index: {}]
  %s11 = sld [smem:[#allocation0]]
  $region93: #{autoencoder_cnn_forward.1} parent=0
    _
  %s13 = ssub.s32 1, %s11
  %s14 = scalar_select 0, %s13, %s11
  $region1: #{autoencoder_cnn_forward.1} parent=0
    #allocation2 [shape = 'u8[32768]{0}', space=vmem, size = 0x8000, scoped, tag = 'input window, operand 1, single buffered']
    #allocation3 [shape = 's32[2]{0}', space=sflag, size = 0x8, scoped, tag = 'scoped memory for autoencoder_cnn_forward.1']
    #allocation4 [shape = 's32[2]{0}', space=sflag, size = 0x8, scoped, tag = 'scoped memory for autoencoder_cnn_forward.1']
    #allocation5 [shape = 'u8[98304]{0}', space=vmem, size = 0x18000, scoped, tag = 'input window, operand 2, single buffered']
    #allocation6 [shape = 's32[1]{0}', space=sflag, size = 0x4, scoped, tag = 'scoped memory for autoencoder_cnn_forward.1']
    #allocation7 [shape = 'u8[98304]{0}', space=vmem, size = 0x18000, scoped, tag = 'input window, operand 4, single buffered']
    #allocation8 [shape = 'u8[98304]{0}', space=vmem, size = 0x18000, scoped, tag = 'input window, operand 6, single buffered']
    #allocation9 [shape = 's32[1]{0}', space=sflag, size = 0x4, scoped, tag = 'scoped memory for autoencoder_cnn_forward.1']
    #allocation10 [shape = 'u8[98304]{0}', space=vmem, size = 0x18000, scoped, tag = 'input window, operand 8, single buffered']
    #allocation11 [shape = 'u8[8192]{0}', space=vmem, size = 0x2000, scoped, tag = 'output window, operand 0']
    %15 = vsyncpa [#allocation3], 0
    %16 = vsyncpa [#allocation6], 0
    %17 = vsyncpa [#allocation9], 0
    %18 = vsyncpa [#allocation4], 0
    %s19 = scalar_lea.sflag [#allocation4], 1
    %20 = vsyncpa %s19, 0
    loop: start=0, step=1, limit=4
    $region2: #{autoencoder_cnn_forward.1} parent=1 // loop_pre_header
      _
    $region3: #{autoencoder_cnn_forward.1} parent=1 // loop_header
      %s22 = sphi 0, %s26
      %p23 = scmp.ge.s32.totalorder %s22, 4
      %s32 = sphi 0, %s34
      %s35 = sphi 0, %s32
      %s36 = sphi 0, %s35
      %s52 = sphi 0, %s36
      %s56 = sphi 0, %s56
      %s58 = sphi 0, %s56
      %s59 = sphi 0, %s58
      %s73 = sphi 0, %s59
      %s77 = sphi 0, %s77
      %s79 = sphi 0, %s77
      %s80 = sphi 0, %s79
      %s94 = sphi 0, %s80
      %s98 = sphi 0, %s98
      %s100 = sphi 0, %s98
      %s101 = sphi 0, %s100
      %s115 = sphi 0, %s101
      %s119 = sphi 0, %s119
      %s121 = sphi 0, %s119
      %s122 = sphi 0, %s121
      %s136 = sphi 0, %s122
      %s140 = sphi 0, %s140
      %s142 = sphi 0, %s140
      %s143 = sphi 0, %s142
      %s157 = sphi 0, %s143
      %s161 = sphi 0, %s161
      %s163 = sphi 0, %s161
      %s164 = sphi 0, %s163
      %s178 = sphi 0, %s164
      %s182 = sphi 0, %s182
      %s184 = sphi 0, %s182
      %s185 = sphi 0, %s184
      %s199 = sphi 0, %s185
      %s203 = sphi 0, %s203
      %s205 = sphi 0, %s203
      %s206 = sphi 0, %s205
      %s220 = sphi 0, %s206
      %s224 = sphi 0, %s224
      %s226 = sphi 0, %s224
      %s227 = sphi 0, %s226
      %s241 = sphi 0, %s227
      %s247 = sphi 0, %s249
      %s250 = sphi 0, %s247
      %s251 = sphi 0, %s250
      %s267 = sphi 0, %s251
    $region4: #{autoencoder_cnn_forward.1} parent=1 // loop_header_branch
      %25 = sbr.rel (%p23) target = $region8
    $region5: #{autoencoder_cnn_forward.1} parent=1 // loop_body
      %s27 = ssub.s32 %s22, 1
      %s28 = ssub.s32 %s22, 2
      %s29 = sadd.s32 %s22, 1
      %s30 = ssub.s32 %s22, %s29
      %p31 = scmp.eq.s32.totalorder %s30, 0
      %s33 = sadd.s32 %s32, 1
      %s34 = scalar_select %p31, %s32, %s33
      %p37 = pneg %p31
      %p38 = scmp.eq.s32.totalorder %s22, 1
      %p39 = por %p37, %p38
      %p40 = scmp.ne.s32.totalorder %s32, %s35
      %p41 = scmp.eq.s32.totalorder %s22, 0
      %p42 = por %p40, %p41
      %p43 = scmp.ne.s32.totalorder %s32, %s35
      %p44 = scmp.eq.s32.totalorder %s27, 1
      %p45 = por %p43, %p44
      %p46 = scmp.ne.s32.totalorder %s35, %s36
      %p47 = scmp.eq.s32.totalorder %s27, 0
      %p48 = por %p46, %p47
      %p49 = scmp.ne.s32.totalorder %s35, %s36
      %p50 = scmp.eq.s32.totalorder %s28, 1
      %p51 = por %p49, %p50
      %p53 = scmp.ne.s32.totalorder %s36, %s52
      %p54 = scmp.eq.s32.totalorder %s28, 0
      %p55 = por %p53, %p54
      %s57 = sadd.s32 %s56, 1
      %p60 = scmp.eq.s32.totalorder %s22, 1
      %p61 = scmp.ne.s32.totalorder %s56, %s58
      %p62 = scmp.eq.s32.totalorder %s22, 0
      %p63 = por %p61, %p62
      %p64 = scmp.ne.s32.totalorder %s56, %s58
      %p65 = scmp.eq.s32.totalorder %s27, 1
      %p66 = por %p64, %p65
      %p67 = scmp.ne.s32.totalorder %s58, %s59
      %p68 = scmp.eq.s32.totalorder %s27, 0
      %p69 = por %p67, %p68
      %p70 = scmp.ne.s32.totalorder %s58, %s59
      %p71 = scmp.eq.s32.totalorder %s28, 1
      %p72 = por %p70, %p71
      %p74 = scmp.ne.s32.totalorder %s59, %s73
      %p75 = scmp.eq.s32.totalorder %s28, 0
      %p76 = por %p74, %p75
      %s78 = sadd.s32 %s77, 1
      %p81 = scmp.eq.s32.totalorder %s22, 1
      %p82 = scmp.ne.s32.totalorder %s77, %s79
      %p83 = scmp.eq.s32.totalorder %s22, 0
      %p84 = por %p82, %p83
      %p85 = scmp.ne.s32.totalorder %s77, %s79
      %p86 = scmp.eq.s32.totalorder %s27, 1
      %p87 = por %p85, %p86
      %p88 = scmp.ne.s32.totalorder %s79, %s80
      %p89 = scmp.eq.s32.totalorder %s27, 0
      %p90 = por %p88, %p89
      %p91 = scmp.ne.s32.totalorder %s79, %s80
      %p92 = scmp.eq.s32.totalorder %s28, 1
      %p93 = por %p91, %p92
      %p95 = scmp.ne.s32.totalorder %s80, %s94
      %p96 = scmp.eq.s32.totalorder %s28, 0
      %p97 = por %p95, %p96
      %s99 = sadd.s32 %s98, 1
      %p102 = scmp.eq.s32.totalorder %s22, 1
      %p103 = scmp.ne.s32.totalorder %s98, %s100
      %p104 = scmp.eq.s32.totalorder %s22, 0
      %p105 = por %p103, %p104
      %p106 = scmp.ne.s32.totalorder %s98, %s100
      %p107 = scmp.eq.s32.totalorder %s27, 1
      %p108 = por %p106, %p107
      %p109 = scmp.ne.s32.totalorder %s100, %s101
      %p110 = scmp.eq.s32.totalorder %s27, 0
      %p111 = por %p109, %p110
      %p112 = scmp.ne.s32.totalorder %s100, %s101
      %p113 = scmp.eq.s32.totalorder %s28, 1
      %p114 = por %p112, %p113
      %p116 = scmp.ne.s32.totalorder %s101, %s115
      %p117 = scmp.eq.s32.totalorder %s28, 0
      %p118 = por %p116, %p117
      %s120 = sadd.s32 %s119, 1
      %p123 = scmp.eq.s32.totalorder %s22, 1
      %p124 = scmp.ne.s32.totalorder %s119, %s121
      %p125 = scmp.eq.s32.totalorder %s22, 0
      %p126 = por %p124, %p125
      %p127 = scmp.ne.s32.totalorder %s119, %s121
      %p128 = scmp.eq.s32.totalorder %s27, 1
      %p129 = por %p127, %p128
      %p130 = scmp.ne.s32.totalorder %s121, %s122
      %p131 = scmp.eq.s32.totalorder %s27, 0
      %p132 = por %p130, %p131
      %p133 = scmp.ne.s32.totalorder %s121, %s122
      %p134 = scmp.eq.s32.totalorder %s28, 1
      %p135 = por %p133, %p134
      %p137 = scmp.ne.s32.totalorder %s122, %s136
      %p138 = scmp.eq.s32.totalorder %s28, 0
      %p139 = por %p137, %p138
      %s141 = sadd.s32 %s140, 1
      %p144 = scmp.eq.s32.totalorder %s22, 1
      %p145 = scmp.ne.s32.totalorder %s140, %s142
      %p146 = scmp.eq.s32.totalorder %s22, 0
      %p147 = por %p145, %p146
      %p148 = scmp.ne.s32.totalorder %s140, %s142
      %p149 = scmp.eq.s32.totalorder %s27, 1
      %p150 = por %p148, %p149
      %p151 = scmp.ne.s32.totalorder %s142, %s143
      %p152 = scmp.eq.s32.totalorder %s27, 0
      %p153 = por %p151, %p152
      %p154 = scmp.ne.s32.totalorder %s142, %s143
      %p155 = scmp.eq.s32.totalorder %s28, 1
      %p156 = por %p154, %p155
      %p158 = scmp.ne.s32.totalorder %s143, %s157
      %p159 = scmp.eq.s32.totalorder %s28, 0
      %p160 = por %p158, %p159
      %s162 = sadd.s32 %s161, 1
      %p165 = scmp.eq.s32.totalorder %s22, 1
      %p166 = scmp.ne.s32.totalorder %s161, %s163
      %p167 = scmp.eq.s32.totalorder %s22, 0
      %p168 = por %p166, %p167
      %p169 = scmp.ne.s32.totalorder %s161, %s163
      %p170 = scmp.eq.s32.totalorder %s27, 1
      %p171 = por %p169, %p170
      %p172 = scmp.ne.s32.totalorder %s163, %s164
      %p173 = scmp.eq.s32.totalorder %s27, 0
      %p174 = por %p172, %p173
      %p175 = scmp.ne.s32.totalorder %s163, %s164
      %p176 = scmp.eq.s32.totalorder %s28, 1
      %p177 = por %p175, %p176
      %p179 = scmp.ne.s32.totalorder %s164, %s178
      %p180 = scmp.eq.s32.totalorder %s28, 0
      %p181 = por %p179, %p180
      %s183 = sadd.s32 %s182, 1
      %p186 = scmp.eq.s32.totalorder %s22, 1
      %p187 = scmp.ne.s32.totalorder %s182, %s184
      %p188 = scmp.eq.s32.totalorder %s22, 0
      %p189 = por %p187, %p188
      %p190 = scmp.ne.s32.totalorder %s182, %s184
      %p191 = scmp.eq.s32.totalorder %s27, 1
      %p192 = por %p190, %p191
      %p193 = scmp.ne.s32.totalorder %s184, %s185
      %p194 = scmp.eq.s32.totalorder %s27, 0
      %p195 = por %p193, %p194
      %p196 = scmp.ne.s32.totalorder %s184, %s185
      %p197 = scmp.eq.s32.totalorder %s28, 1
      %p198 = por %p196, %p197
      %p200 = scmp.ne.s32.totalorder %s185, %s199
      %p201 = scmp.eq.s32.totalorder %s28, 0
      %p202 = por %p200, %p201
      %s204 = sadd.s32 %s203, 1
      %p207 = scmp.eq.s32.totalorder %s22, 1
      %p208 = scmp.ne.s32.totalorder %s203, %s205
      %p209 = scmp.eq.s32.totalorder %s22, 0
      %p210 = por %p208, %p209
      %p211 = scmp.ne.s32.totalorder %s203, %s205
      %p212 = scmp.eq.s32.totalorder %s27, 1
      %p213 = por %p211, %p212
      %p214 = scmp.ne.s32.totalorder %s205, %s206
      %p215 = scmp.eq.s32.totalorder %s27, 0
      %p216 = por %p214, %p215
      %p217 = scmp.ne.s32.totalorder %s205, %s206
      %p218 = scmp.eq.s32.totalorder %s28, 1
      %p219 = por %p217, %p218
      %p221 = scmp.ne.s32.totalorder %s206, %s220
      %p222 = scmp.eq.s32.totalorder %s28, 0
      %p223 = por %p221, %p222
      %s225 = sadd.s32 %s224, 1
      %p228 = scmp.eq.s32.totalorder %s22, 1
      %p229 = scmp.ne.s32.totalorder %s224, %s226
      %p230 = scmp.eq.s32.totalorder %s22, 0
      %p231 = por %p229, %p230
      %p232 = scmp.ne.s32.totalorder %s224, %s226
      %p233 = scmp.eq.s32.totalorder %s27, 1
      %p234 = por %p232, %p233
      %p235 = scmp.ne.s32.totalorder %s226, %s227
      %p236 = scmp.eq.s32.totalorder %s27, 0
      %p237 = por %p235, %p236
      %p238 = scmp.ne.s32.totalorder %s226, %s227
      %p239 = scmp.eq.s32.totalorder %s28, 1
      %p240 = por %p238, %p239
      %p242 = scmp.ne.s32.totalorder %s227, %s241
      %p243 = scmp.eq.s32.totalorder %s28, 0
      %p244 = por %p242, %p243
      %s245 = ssub.s32 %s22, %s29
      %p246 = scmp.eq.s32.totalorder %s245, 0
      %s248 = sadd.s32 %s247, 1
      %s249 = scalar_select %p246, %s247, %s248
      %p252 = pneg %p246
      %p253 = scmp.eq.s32.totalorder %s22, 1
      %p254 = por %p252, %p253
      %p255 = scmp.ne.s32.totalorder %s247, %s250
      %p256 = scmp.eq.s32.totalorder %s22, 0
      %p257 = por %p255, %p256
      %p258 = scmp.ne.s32.totalorder %s247, %s250
      %p259 = scmp.eq.s32.totalorder %s27, 1
      %p260 = por %p258, %p259
      %p261 = scmp.ne.s32.totalorder %s250, %s251
      %p262 = scmp.eq.s32.totalorder %s27, 0
      %p263 = por %p261, %p262
      %p264 = scmp.ne.s32.totalorder %s250, %s251
      %p265 = scmp.eq.s32.totalorder %s28, 1
      %p266 = por %p264, %p265
      %p268 = scmp.ne.s32.totalorder %s251, %s267
      %p269 = scmp.eq.s32.totalorder %s28, 0
      %p270 = por %p268, %p269
      %p271 = scmp.le.s32.totalorder 1, %s22
      %p272 = scmp.lt.s32.totalorder %s22, 3
      %p273 = pnand %p271, %p272
      %p274 = pneg %p273
      // Predicated region
      $region9: #{autoencoder_cnn_forward.1} parent=5 // pred_check
        _
      $region10: #{autoencoder_cnn_forward.1} parent=5 // pred_check_branch
        %276 = sbr.rel (%p273) target = $region12
      $region11: #{autoencoder_cnn_forward.1} parent=5 // pred_region
        %s277 = ssub.s32 %s22, 1
        // Predicated region
        $region13: #{autoencoder_cnn_forward.1} parent=11 // pred_check
          %p278 = pneg %p69
        $region14: #{autoencoder_cnn_forward.1} parent=11 // pred_check_branch
          %280 = sbr.rel (%p278) target = $region16
        $region15: #{autoencoder_cnn_forward.1} parent=11 // pred_region
          %282 = vsyncadd [#allocation3], 0
          %s283 = sshll.u32 %s1, 4
          %s284 = int_to_ptr.hbm [resolvable:$true] %s283
          %s285 = sshll.u32 [#allocation2], 4
          %s286 = int_to_ptr.vmem [resolvable:$true] %s285
          %291 = dma.hbm_to_vmem [thread:$0]  %s284, 1024, %s286, [#allocation3], 64, 64, 4
        $region16: #{autoencoder_cnn_forward.1} parent=11 // pred_fallthru
          _
        // Predicated region
        $region17: #{autoencoder_cnn_forward.1} parent=11 // pred_check
          %p292 = pneg %p90
        $region18: #{autoencoder_cnn_forward.1} parent=11 // pred_check_branch
          %294 = sbr.rel (%p292) target = $region20
        $region19: #{autoencoder_cnn_forward.1} parent=11 // pred_region
          %296 = vsyncadd [#allocation6], 0
          %s297 = sshll.u32 %s2, 4
          %s298 = int_to_ptr.hbm [resolvable:$true] %s297
          %s299 = sshll.u32 [#allocation5], 4
          %s300 = int_to_ptr.vmem [resolvable:$true] %s299
          %305 = dma.hbm_to_vmem [thread:$0]  %s298, 3072, %s300, [#allocation6], 64, 64, 4
        $region20: #{autoencoder_cnn_forward.1} parent=11 // pred_fallthru
          _
        // Predicated region
        $region21: #{autoencoder_cnn_forward.1} parent=11 // pred_check
          %p306 = pneg %p111
        $region22: #{autoencoder_cnn_forward.1} parent=11 // pred_check_branch
          %308 = sbr.rel (%p306) target = $region24
        $region23: #{autoencoder_cnn_forward.1} parent=11 // pred_region
          _
        $region24: #{autoencoder_cnn_forward.1} parent=11 // pred_fallthru
          _
        // Predicated region
        $region25: #{autoencoder_cnn_forward.1} parent=11 // pred_check
          %p309 = pneg %p132
        $region26: #{autoencoder_cnn_forward.1} parent=11 // pred_check_branch
          %311 = sbr.rel (%p309) target = $region28
        $region27: #{autoencoder_cnn_forward.1} parent=11 // pred_region
          %313 = vsyncadd [#allocation6], 0
          %s314 = sshll.u32 %s4, 4
          %s315 = int_to_ptr.hbm [resolvable:$true] %s314
          %s316 = sshll.u32 [#allocation7], 4
          %s317 = int_to_ptr.vmem [resolvable:$true] %s316
          %322 = dma.hbm_to_vmem [thread:$0]  %s315, 3072, %s317, [#allocation6], 64, 64, 4
        $region28: #{autoencoder_cnn_forward.1} parent=11 // pred_fallthru
          _
        // Predicated region
        $region29: #{autoencoder_cnn_forward.1} parent=11 // pred_check
          %p323 = pneg %p153
        $region30: #{autoencoder_cnn_forward.1} parent=11 // pred_check_branch
          %325 = sbr.rel (%p323) target = $region32
        $region31: #{autoencoder_cnn_forward.1} parent=11 // pred_region
          _
        $region32: #{autoencoder_cnn_forward.1} parent=11 // pred_fallthru
          _
        // Predicated region
        $region33: #{autoencoder_cnn_forward.1} parent=11 // pred_check
          %p326 = pneg %p174
        $region34: #{autoencoder_cnn_forward.1} parent=11 // pred_check_branch
          %328 = sbr.rel (%p326) target = $region36
        $region35: #{autoencoder_cnn_forward.1} parent=11 // pred_region
          %330 = vsyncadd [#allocation9], 0
          %s331 = sshll.u32 %s6, 4
          %s332 = int_to_ptr.hbm [resolvable:$true] %s331
          %s333 = sshll.u32 [#allocation8], 4
          %s334 = int_to_ptr.vmem [resolvable:$true] %s333
          %339 = dma.hbm_to_vmem [thread:$0]  %s332, 3072, %s334, [#allocation9], 64, 64, 4
        $region36: #{autoencoder_cnn_forward.1} parent=11 // pred_fallthru
          _
        // Predicated region
        $region37: #{autoencoder_cnn_forward.1} parent=11 // pred_check
          %p340 = pneg %p195
        $region38: #{autoencoder_cnn_forward.1} parent=11 // pred_check_branch
          %342 = sbr.rel (%p340) target = $region40
        $region39: #{autoencoder_cnn_forward.1} parent=11 // pred_region
          _
        $region40: #{autoencoder_cnn_forward.1} parent=11 // pred_fallthru
          _
        // Predicated region
        $region41: #{autoencoder_cnn_forward.1} parent=11 // pred_check
          %p343 = pneg %p216
        $region42: #{autoencoder_cnn_forward.1} parent=11 // pred_check_branch
          %345 = sbr.rel (%p343) target = $region44
        $region43: #{autoencoder_cnn_forward.1} parent=11 // pred_region
          %347 = vsyncadd [#allocation9], 0
          %s348 = sshll.u32 %s8, 4
          %s349 = int_to_ptr.hbm [resolvable:$true] %s348
          %s350 = sshll.u32 [#allocation10], 4
          %s351 = int_to_ptr.vmem [resolvable:$true] %s350
          %356 = dma.hbm_to_vmem [thread:$0]  %s349, 3072, %s351, [#allocation9], 64, 64, 4
        $region44: #{autoencoder_cnn_forward.1} parent=11 // pred_fallthru
          _
        // Predicated region
        $region45: #{autoencoder_cnn_forward.1} parent=11 // pred_check
          %p357 = pneg %p237
        $region46: #{autoencoder_cnn_forward.1} parent=11 // pred_check_branch
          %359 = sbr.rel (%p357) target = $region48
        $region47: #{autoencoder_cnn_forward.1} parent=11 // pred_region
          _
        $region48: #{autoencoder_cnn_forward.1} parent=11 // pred_fallthru
          _
      $region12: #{autoencoder_cnn_forward.1} parent=5 // pred_fallthru
        _
      %p360 = scmp.lt.s32.totalorder %s22, 2
      // Predicated region
      $region49: #{autoencoder_cnn_forward.1} parent=5 // pred_check
        %p361 = pneg %p360
      $region50: #{autoencoder_cnn_forward.1} parent=5 // pred_check_branch
        %363 = sbr.rel (%p361) target = $region52
      $region51: #{autoencoder_cnn_forward.1} parent=5 // pred_region
        // Predicated region
        $region53: #{autoencoder_cnn_forward.1} parent=51 // pred_check
          %p364 = pneg %p42
        $region54: #{autoencoder_cnn_forward.1} parent=51 // pred_check_branch
          %366 = sbr.rel (%p364) target = $region56
        $region55: #{autoencoder_cnn_forward.1} parent=51 // pred_region
          %p367 = scmp.lt.s32.totalorder %s22, 1
          %s368 = scalar_select %p367, %s22, 1
          %s369 = smul.addr %s368, 8
          %s370 = scalar_lea.vmem %s0, %s369
        $region56: #{autoencoder_cnn_forward.1} parent=51 // pred_fallthru
          _
      $region52: #{autoencoder_cnn_forward.1} parent=5 // pred_fallthru
        _
      %p371 = scmp.le.s32.totalorder 1, %s22
      %p372 = scmp.lt.s32.totalorder %s22, 3
      %p373 = pnand %p371, %p372
      %p374 = pneg %p373
      // Predicated region
      $region57: #{autoencoder_cnn_forward.1} parent=5 // pred_check
        _
      $region58: #{autoencoder_cnn_forward.1} parent=5 // pred_check_branch
        %376 = sbr.rel (%p373) target = $region60
      $region59: #{autoencoder_cnn_forward.1} parent=5 // pred_region
        %s377 = ssub.s32 %s22, 1
        // Predicated region
        $region61: #{autoencoder_cnn_forward.1} parent=59 // pred_check
          %p378 = pneg %p69
        $region62: #{autoencoder_cnn_forward.1} parent=59 // pred_check_branch
          %380 = sbr.rel (%p378) target = $region64
        $region63: #{autoencoder_cnn_forward.1} parent=59 // pred_region
          %382 = dma.done [#allocation3], 1024
        $region64: #{autoencoder_cnn_forward.1} parent=59 // pred_fallthru
          _
        // Predicated region
        $region65: #{autoencoder_cnn_forward.1} parent=59 // pred_check
          %p383 = pneg %p90
        $region66: #{autoencoder_cnn_forward.1} parent=59 // pred_check_branch
          %385 = sbr.rel (%p383) target = $region68
        $region67: #{autoencoder_cnn_forward.1} parent=59 // pred_region
          %387 = dma.done [#allocation6], 3072
        $region68: #{autoencoder_cnn_forward.1} parent=59 // pred_fallthru
          _
        // Predicated region
        $region69: #{autoencoder_cnn_forward.1} parent=59 // pred_check
          %p388 = pneg %p132
        $region70: #{autoencoder_cnn_forward.1} parent=59 // pred_check_branch
          %390 = sbr.rel (%p388) target = $region72
        $region71: #{autoencoder_cnn_forward.1} parent=59 // pred_region
          %392 = dma.done [#allocation6], 3072
        $region72: #{autoencoder_cnn_forward.1} parent=59 // pred_fallthru
          _
        // Predicated region
        $region73: #{autoencoder_cnn_forward.1} parent=59 // pred_check
          %p393 = pneg %p174
        $region74: #{autoencoder_cnn_forward.1} parent=59 // pred_check_branch
          %395 = sbr.rel (%p393) target = $region76
        $region75: #{autoencoder_cnn_forward.1} parent=59 // pred_region
          %397 = dma.done [#allocation9], 3072
        $region76: #{autoencoder_cnn_forward.1} parent=59 // pred_fallthru
          _
        // Predicated region
        $region77: #{autoencoder_cnn_forward.1} parent=59 // pred_check
          %p398 = pneg %p216
        $region78: #{autoencoder_cnn_forward.1} parent=59 // pred_check_branch
          %400 = sbr.rel (%p398) target = $region80
        $region79: #{autoencoder_cnn_forward.1} parent=59 // pred_region
          %402 = dma.done [#allocation9], 3072
        $region80: #{autoencoder_cnn_forward.1} parent=59 // pred_fallthru
          _
        %p403 = scmp.lt.s32.totalorder %s27, 1
        %s404 = scalar_select %p403, %s27, 1
        %s405 = smul.addr %s404, 8
        %s406 = scalar_lea.vmem %s0, %s405
        %p407 = pneg %p48
        %p408 = pneg %p45
        %p409 = pneg %p69
        %p410 = pneg %p66
        %p411 = pneg %p90
        %p412 = pneg %p87
        %p413 = pneg %p111
        %p414 = pneg %p108
        %p415 = pneg %p132
        %p416 = pneg %p129
        %p417 = pneg %p153
        %p418 = pneg %p150
        %p419 = pneg %p174
        %p420 = pneg %p171
        %p421 = pneg %p195
        %p422 = pneg %p192
        %p423 = pneg %p216
        %p424 = pneg %p213
        %p425 = pneg %p237
        %p426 = pneg %p234
        %p427 = pneg %p263
        %p428 = pneg %p260
        %s429 = sand.u32 %s250, 1
        %s430 = scalar_lea.sflag [#allocation4], %s429
        %s431 = sand.u32 %s250, 1
        %s432 = smul.addr %s431, 8
        %s433 = scalar_lea.vmem [#allocation11], %s432
        %p434 = scmp.lt.s32.totalorder %s27, 1
        %s435 = scalar_select %p434, %s27, 1
        %s436 = smul.addr %s435, 8
        %s437 = scalar_lea.vmem %s0, %s436
        %v438 = vlaneseq
        %v439 = vshrl.u32 %v438, 7
        %vm440 = vcmp.ne.s32.totalorder %v439, 0
        %v441 = vsel %vm440, 1, 0
        %v442 = vcvt.s32.f32 %v441
        %vm443 = vcmp.ne.s32.totalorder %v439, 7
        %v444 = vsel %vm443, 1, 0
        %v445 = vcvt.s32.f32 %v444
        %v446 = vld [vmem:[%s437] sm:$0xff]
        %v447 = vlaneseq
        %v448 = vand.u32 %v447, 127
        %449 = vset.pattern.permute.xlu0 0
        %450 = vperm.xlu0 %449, %v446
        %v451 = vpop.permute.xlu0 %450
        %vm452 = vcmp.eq.s32.totalorder %v448, %v451
        %v453 = vsel %vm452, 1, 0
        %v454 = vcvt.s32.f32 %v453
        %v455 = vpack.c.bf16 %v454, %v454
        %v456 = vld [vmem:[#allocation2] sm:$0xf]
        %v457 = vld [vmem:[#allocation2 + $0x4] sm:$0xf]
        %v458 = vld [vmem:[#allocation2 + $0x8] sm:$0xf]
        %v459 = vld [vmem:[#allocation2 + $0xc] sm:$0xf]
        %v460 = vld [vmem:[#allocation2 + $0x10] sm:$0xf]
        %v461 = vld [vmem:[#allocation2 + $0x14] sm:$0xf]
        %v462 = vld [vmem:[#allocation2 + $0x18] sm:$0xf]
        %v463 = vld [vmem:[#allocation2 + $0x1c] sm:$0xf]
        %v464 = vld [vmem:[#allocation2 + $0x20] sm:$0xf]
        %v465 = vld [vmem:[#allocation2 + $0x24] sm:$0xf]
        %v466 = vld [vmem:[#allocation2 + $0x28] sm:$0xf]
        %v467 = vld [vmem:[#allocation2 + $0x2c] sm:$0xf]
        %v468 = vld [vmem:[#allocation2 + $0x30] sm:$0xf]
        %v469 = vld [vmem:[#allocation2 + $0x34] sm:$0xf]
        %v470 = vld [vmem:[#allocation2 + $0x38] sm:$0xf]
        %v471 = vld [vmem:[#allocation2 + $0x3c] sm:$0xf]
        %v488 = vunpack.c.l.b16 %v456
        %v489 = vunpack.c.l.b16 %v457
        %v490 = vunpack.c.l.b16 %v458
        %v491 = vunpack.c.l.b16 %v459
        %v492 = vunpack.c.l.b16 %v460
        %v493 = vunpack.c.l.b16 %v461
        %v494 = vunpack.c.l.b16 %v462
        %v495 = vunpack.c.l.b16 %v463
        %v496 = vunpack.c.l.b16 %v464
        %v497 = vunpack.c.l.b16 %v465
        %v498 = vunpack.c.l.b16 %v466
        %v499 = vunpack.c.l.b16 %v467
        %v500 = vunpack.c.l.b16 %v468
        %v501 = vunpack.c.l.b16 %v469
        %v502 = vunpack.c.l.b16 %v470
        %v503 = vunpack.c.l.b16 %v471
        %v504 = vpack.c.b16 %v489, %v488
        %v505 = vpack.c.b16 %v491, %v490
        %v506 = vpack.c.b16 %v493, %v492
        %v507 = vpack.c.b16 %v495, %v494
        %v508 = vpack.c.b16 %v497, %v496
        %v509 = vpack.c.b16 %v499, %v498
        %v510 = vpack.c.b16 %v501, %v500
        %v511 = vpack.c.b16 %v503, %v502
        %520 = vmatpush.bf16.msra.mxu0 %v511
        %521 = vmatpush.bf16.msra.mxu0 %v510
        %522 = vmatpush.bf16.msra.mxu0 %v509
        %523 = vmatpush.bf16.msra.mxu0 %v508
        %524 = vmatpush.bf16.msra.mxu0 %v507
        %525 = vmatpush.bf16.msra.mxu0 %v506
        %526 = vmatpush.bf16.msra.mxu0 %v505
        %527 = vmatpush.bf16.msra.mxu0 %v504
        %528 = vmatmul.bf16.gmra.mxu0 %v455
        %v529 = vpop.f32.mrf.mxu0
        %v530 = vadd.f32 0.0, %v529
        %v531 = vpop.f32.mrf.mxu0
        %532 = vdwg.mxu0
        %v533 = vrot.slane %v530, 7
        %v534 = vmul.f32 %v533, %v442
        %v535 = vrot.slane %v530, 1
        %v536 = vmul.f32 %v535, %v445
        %v537 = vpack.c.bf16 %v534, %v534
        %v538 = vpack.c.bf16 %v530, %v530
        %v539 = vpack.c.bf16 %v536, %v536
        %v540 = vld [vmem:[#allocation5] sm:$0xf]
        %v541 = vld [vmem:[#allocation5 + $0x4] sm:$0xf]
        %v542 = vld [vmem:[#allocation5 + $0x8] sm:$0xf]
        %v543 = vld [vmem:[#allocation5 + $0xc] sm:$0xf]
        %v544 = vld [vmem:[#allocation5 + $0x10] sm:$0xf]
        %v545 = vld [vmem:[#allocation5 + $0x14] sm:$0xf]
        %v546 = vld [vmem:[#allocation5 + $0x18] sm:$0xf]
        %v547 = vld [vmem:[#allocation5 + $0x1c] sm:$0xf]
        %v548 = vld [vmem:[#allocation5 + $0x20] sm:$0xf]
        %v549 = vld [vmem:[#allocation5 + $0x24] sm:$0xf]
        %v550 = vld [vmem:[#allocation5 + $0x28] sm:$0xf]
        %v551 = vld [vmem:[#allocation5 + $0x2c] sm:$0xf]
        %v552 = vld [vmem:[#allocation5 + $0x30] sm:$0xf]
        %v553 = vld [vmem:[#allocation5 + $0x34] sm:$0xf]
        %v554 = vld [vmem:[#allocation5 + $0x38] sm:$0xf]
        %v555 = vld [vmem:[#allocation5 + $0x3c] sm:$0xf]
        %v556 = vld [vmem:[#allocation5 + $0x40] sm:$0xf]
        %v557 = vld [vmem:[#allocation5 + $0x44] sm:$0xf]
        %v558 = vld [vmem:[#allocation5 + $0x48] sm:$0xf]
        %v559 = vld [vmem:[#allocation5 + $0x4c] sm:$0xf]
        %v560 = vld [vmem:[#allocation5 + $0x50] sm:$0xf]
        %v561 = vld [vmem:[#allocation5 + $0x54] sm:$0xf]
        %v562 = vld [vmem:[#allocation5 + $0x58] sm:$0xf]
        %v563 = vld [vmem:[#allocation5 + $0x5c] sm:$0xf]
        %v564 = vld [vmem:[#allocation5 + $0x60] sm:$0xf]
        %v565 = vld [vmem:[#allocation5 + $0x64] sm:$0xf]
        %v566 = vld [vmem:[#allocation5 + $0x68] sm:$0xf]
        %v567 = vld [vmem:[#allocation5 + $0x6c] sm:$0xf]
        %v568 = vld [vmem:[#allocation5 + $0x70] sm:$0xf]
        %v569 = vld [vmem:[#allocation5 + $0x74] sm:$0xf]
        %v570 = vld [vmem:[#allocation5 + $0x78] sm:$0xf]
        %v571 = vld [vmem:[#allocation5 + $0x7c] sm:$0xf]
        %v572 = vld [vmem:[#allocation5 + $0x80] sm:$0xf]
        %v573 = vld [vmem:[#allocation5 + $0x84] sm:$0xf]
        %v574 = vld [vmem:[#allocation5 + $0x88] sm:$0xf]
        %v575 = vld [vmem:[#allocation5 + $0x8c] sm:$0xf]
        %v576 = vld [vmem:[#allocation5 + $0x90] sm:$0xf]
        %v577 = vld [vmem:[#allocation5 + $0x94] sm:$0xf]
        %v578 = vld [vmem:[#allocation5 + $0x98] sm:$0xf]
        %v579 = vld [vmem:[#allocation5 + $0x9c] sm:$0xf]
        %v580 = vld [vmem:[#allocation5 + $0xa0] sm:$0xf]
        %v581 = vld [vmem:[#allocation5 + $0xa4] sm:$0xf]
        %v582 = vld [vmem:[#allocation5 + $0xa8] sm:$0xf]
        %v583 = vld [vmem:[#allocation5 + $0xac] sm:$0xf]
        %v584 = vld [vmem:[#allocation5 + $0xb0] sm:$0xf]
        %v585 = vld [vmem:[#allocation5 + $0xb4] sm:$0xf]
        %v586 = vld [vmem:[#allocation5 + $0xb8] sm:$0xf]
        %v587 = vld [vmem:[#allocation5 + $0xbc] sm:$0xf]
        %v588 = vld [vmem:[%s3] sm:$0x1]
        %v590 = vperm.slane %v588, 0
        %v640 = vunpack.c.l.b16 %v540
        %v641 = vunpack.c.l.b16 %v541
        %v642 = vunpack.c.l.b16 %v542
        %v643 = vunpack.c.l.b16 %v543
        %v644 = vunpack.c.l.b16 %v544
        %v645 = vunpack.c.l.b16 %v545
        %v646 = vunpack.c.l.b16 %v546
        %v647 = vunpack.c.l.b16 %v547
        %v648 = vunpack.c.l.b16 %v548
        %v649 = vunpack.c.l.b16 %v549
        %v650 = vunpack.c.l.b16 %v550
        %v651 = vunpack.c.l.b16 %v551
        %v652 = vunpack.c.l.b16 %v552
        %v653 = vunpack.c.l.b16 %v553
        %v654 = vunpack.c.l.b16 %v554
        %v655 = vunpack.c.l.b16 %v555
        %v656 = vunpack.c.l.b16 %v556
        %v657 = vunpack.c.l.b16 %v557
        %v658 = vunpack.c.l.b16 %v558
        %v659 = vunpack.c.l.b16 %v559
        %v660 = vunpack.c.l.b16 %v560
        %v661 = vunpack.c.l.b16 %v561
        %v662 = vunpack.c.l.b16 %v562
        %v663 = vunpack.c.l.b16 %v563
        %v664 = vunpack.c.l.b16 %v564
        %v665 = vunpack.c.l.b16 %v565
        %v666 = vunpack.c.l.b16 %v566
        %v667 = vunpack.c.l.b16 %v567
        %v668 = vunpack.c.l.b16 %v568
        %v669 = vunpack.c.l.b16 %v569
        %v670 = vunpack.c.l.b16 %v570
        %v671 = vunpack.c.l.b16 %v571
        %v672 = vunpack.c.l.b16 %v572
        %v673 = vunpack.c.l.b16 %v573
        %v674 = vunpack.c.l.b16 %v574
        %v675 = vunpack.c.l.b16 %v575
        %v676 = vunpack.c.l.b16 %v576
        %v677 = vunpack.c.l.b16 %v577
        %v678 = vunpack.c.l.b16 %v578
        %v679 = vunpack.c.l.b16 %v579
        %v680 = vunpack.c.l.b16 %v580
        %v681 = vunpack.c.l.b16 %v581
        %v682 = vunpack.c.l.b16 %v582
        %v683 = vunpack.c.l.b16 %v583
        %v684 = vunpack.c.l.b16 %v584
        %v685 = vunpack.c.l.b16 %v585
        %v686 = vunpack.c.l.b16 %v586
        %v687 = vunpack.c.l.b16 %v587
        %v688 = vpack.c.b16 %v641, %v640
        %v689 = vpack.c.b16 %v643, %v642
        %v690 = vpack.c.b16 %v645, %v644
        %v691 = vpack.c.b16 %v647, %v646
        %v692 = vpack.c.b16 %v649, %v648
        %v693 = vpack.c.b16 %v651, %v650
        %v694 = vpack.c.b16 %v653, %v652
        %v695 = vpack.c.b16 %v655, %v654
        %v696 = vpack.c.b16 %v657, %v656
        %v697 = vpack.c.b16 %v659, %v658
        %v698 = vpack.c.b16 %v661, %v660
        %v699 = vpack.c.b16 %v663, %v662
        %v700 = vpack.c.b16 %v665, %v664
        %v701 = vpack.c.b16 %v667, %v666
        %v702 = vpack.c.b16 %v669, %v668
        %v703 = vpack.c.b16 %v671, %v670
        %v704 = vpack.c.b16 %v673, %v672
        %v705 = vpack.c.b16 %v675, %v674
        %v706 = vpack.c.b16 %v677, %v676
        %v707 = vpack.c.b16 %v679, %v678
        %v708 = vpack.c.b16 %v681, %v680
        %v709 = vpack.c.b16 %v683, %v682
        %v710 = vpack.c.b16 %v685, %v684
        %v711 = vpack.c.b16 %v687, %v686
        %736 = vmatpush.bf16.msra.mxu0 %v695
        %737 = vmatpush.bf16.msra.mxu0 %v694
        %738 = vmatpush.bf16.msra.mxu0 %v693
        %739 = vmatpush.bf16.msra.mxu0 %v692
        %740 = vmatpush.bf16.msra.mxu0 %v691
        %741 = vmatpush.bf16.msra.mxu0 %v690
        %742 = vmatpush.bf16.msra.mxu0 %v689
        %743 = vmatpush.bf16.msra.mxu0 %v688
        %744 = vmatmul.bf16.gmra.mxu0 %v537
        %v745 = vpop.f32.mrf.mxu0
        %v746 = vadd.f32 %v590, %v745
        %v747 = vpop.f32.mrf.mxu0
        %748 = vdwg.mxu0
        %749 = vmatpush.bf16.msra.mxu0 %v703
        %750 = vmatpush.bf16.msra.mxu0 %v702
        %751 = vmatpush.bf16.msra.mxu0 %v701
        %752 = vmatpush.bf16.msra.mxu0 %v700
        %753 = vmatpush.bf16.msra.mxu0 %v699
        %754 = vmatpush.bf16.msra.mxu0 %v698
        %755 = vmatpush.bf16.msra.mxu0 %v697
        %756 = vmatpush.bf16.msra.mxu0 %v696
        %757 = vmatmul.bf16.gmra.mxu0 %v538
        %v758 = vpop.f32.mrf.mxu0
        %v759 = vadd.f32 %v746, %v758
        %v760 = vpop.f32.mrf.mxu0
        %761 = vdwg.mxu0
        %762 = vmatpush.bf16.msra.mxu0 %v711
        %763 = vmatpush.bf16.msra.mxu0 %v710
        %764 = vmatpush.bf16.msra.mxu0 %v709
        %765 = vmatpush.bf16.msra.mxu0 %v708
        %766 = vmatpush.bf16.msra.mxu0 %v707
        %767 = vmatpush.bf16.msra.mxu0 %v706
        %768 = vmatpush.bf16.msra.mxu0 %v705
        %769 = vmatpush.bf16.msra.mxu0 %v704
        %770 = vmatmul.bf16.gmra.mxu0 %v539
        %v771 = vpop.f32.mrf.mxu0
        %v772 = vadd.f32 %v759, %v771
        %v773 = vpop.f32.mrf.mxu0
        %774 = vdwg.mxu0
        %v775 = vmax.f32 %v772, 0.0
        %v776 = vrot.slane %v775, 7
        %v777 = vmul.f32 %v776, %v442
        %v778 = vrot.slane %v775, 1
        %v779 = vmul.f32 %v778, %v445
        %v780 = vpack.c.bf16 %v777, %v777
        %v781 = vpack.c.bf16 %v775, %v775
        %v782 = vpack.c.bf16 %v779, %v779
        %v783 = vld [vmem:[#allocation7] sm:$0xf]
        %v784 = vld [vmem:[#allocation7 + $0x4] sm:$0xf]
        %v785 = vld [vmem:[#allocation7 + $0x8] sm:$0xf]
        %v786 = vld [vmem:[#allocation7 + $0xc] sm:$0xf]
        %v787 = vld [vmem:[#allocation7 + $0x10] sm:$0xf]
        %v788 = vld [vmem:[#allocation7 + $0x14] sm:$0xf]
        %v789 = vld [vmem:[#allocation7 + $0x18] sm:$0xf]
        %v790 = vld [vmem:[#allocation7 + $0x1c] sm:$0xf]
        %v791 = vld [vmem:[#allocation7 + $0x20] sm:$0xf]
        %v792 = vld [vmem:[#allocation7 + $0x24] sm:$0xf]
        %v793 = vld [vmem:[#allocation7 + $0x28] sm:$0xf]
        %v794 = vld [vmem:[#allocation7 + $0x2c] sm:$0xf]
        %v795 = vld [vmem:[#allocation7 + $0x30] sm:$0xf]
        %v796 = vld [vmem:[#allocation7 + $0x34] sm:$0xf]
        %v797 = vld [vmem:[#allocation7 + $0x38] sm:$0xf]
        %v798 = vld [vmem:[#allocation7 + $0x3c] sm:$0xf]
        %v799 = vld [vmem:[#allocation7 + $0x40] sm:$0xf]
        %v800 = vld [vmem:[#allocation7 + $0x44] sm:$0xf]
        %v801 = vld [vmem:[#allocation7 + $0x48] sm:$0xf]
        %v802 = vld [vmem:[#allocation7 + $0x4c] sm:$0xf]
        %v803 = vld [vmem:[#allocation7 + $0x50] sm:$0xf]
        %v804 = vld [vmem:[#allocation7 + $0x54] sm:$0xf]
        %v805 = vld [vmem:[#allocation7 + $0x58] sm:$0xf]
        %v806 = vld [vmem:[#allocation7 + $0x5c] sm:$0xf]
        %v807 = vld [vmem:[#allocation7 + $0x60] sm:$0xf]
        %v808 = vld [vmem:[#allocation7 + $0x64] sm:$0xf]
        %v809 = vld [vmem:[#allocation7 + $0x68] sm:$0xf]
        %v810 = vld [vmem:[#allocation7 + $0x6c] sm:$0xf]
        %v811 = vld [vmem:[#allocation7 + $0x70] sm:$0xf]
        %v812 = vld [vmem:[#allocation7 + $0x74] sm:$0xf]
        %v813 = vld [vmem:[#allocation7 + $0x78] sm:$0xf]
        %v814 = vld [vmem:[#allocation7 + $0x7c] sm:$0xf]
        %v815 = vld [vmem:[#allocation7 + $0x80] sm:$0xf]
        %v816 = vld [vmem:[#allocation7 + $0x84] sm:$0xf]
        %v817 = vld [vmem:[#allocation7 + $0x88] sm:$0xf]
        %v818 = vld [vmem:[#allocation7 + $0x8c] sm:$0xf]
        %v819 = vld [vmem:[#allocation7 + $0x90] sm:$0xf]
        %v820 = vld [vmem:[#allocation7 + $0x94] sm:$0xf]
        %v821 = vld [vmem:[#allocation7 + $0x98] sm:$0xf]
        %v822 = vld [vmem:[#allocation7 + $0x9c] sm:$0xf]
        %v823 = vld [vmem:[#allocation7 + $0xa0] sm:$0xf]
        %v824 = vld [vmem:[#allocation7 + $0xa4] sm:$0xf]
        %v825 = vld [vmem:[#allocation7 + $0xa8] sm:$0xf]
        %v826 = vld [vmem:[#allocation7 + $0xac] sm:$0xf]
        %v827 = vld [vmem:[#allocation7 + $0xb0] sm:$0xf]
        %v828 = vld [vmem:[#allocation7 + $0xb4] sm:$0xf]
        %v829 = vld [vmem:[#allocation7 + $0xb8] sm:$0xf]
        %v830 = vld [vmem:[#allocation7 + $0xbc] sm:$0xf]
        %v831 = vld [vmem:[%s5] sm:$0x1]
        %v833 = vperm.slane %v831, 0
        %v883 = vunpack.c.l.b16 %v783
        %v884 = vunpack.c.l.b16 %v784
        %v885 = vunpack.c.l.b16 %v785
        %v886 = vunpack.c.l.b16 %v786
        %v887 = vunpack.c.l.b16 %v787
        %v888 = vunpack.c.l.b16 %v788
        %v889 = vunpack.c.l.b16 %v789
        %v890 = vunpack.c.l.b16 %v790
        %v891 = vunpack.c.l.b16 %v791
        %v892 = vunpack.c.l.b16 %v792
        %v893 = vunpack.c.l.b16 %v793
        %v894 = vunpack.c.l.b16 %v794
        %v895 = vunpack.c.l.b16 %v795
        %v896 = vunpack.c.l.b16 %v796
        %v897 = vunpack.c.l.b16 %v797
        %v898 = vunpack.c.l.b16 %v798
        %v899 = vunpack.c.l.b16 %v799
        %v900 = vunpack.c.l.b16 %v800
        %v901 = vunpack.c.l.b16 %v801
        %v902 = vunpack.c.l.b16 %v802
        %v903 = vunpack.c.l.b16 %v803
        %v904 = vunpack.c.l.b16 %v804
        %v905 = vunpack.c.l.b16 %v805
        %v906 = vunpack.c.l.b16 %v806
        %v907 = vunpack.c.l.b16 %v807
        %v908 = vunpack.c.l.b16 %v808
        %v909 = vunpack.c.l.b16 %v809
        %v910 = vunpack.c.l.b16 %v810
        %v911 = vunpack.c.l.b16 %v811
        %v912 = vunpack.c.l.b16 %v812
        %v913 = vunpack.c.l.b16 %v813
        %v914 = vunpack.c.l.b16 %v814
        %v915 = vunpack.c.l.b16 %v815
        %v916 = vunpack.c.l.b16 %v816
        %v917 = vunpack.c.l.b16 %v817
        %v918 = vunpack.c.l.b16 %v818
        %v919 = vunpack.c.l.b16 %v819
        %v920 = vunpack.c.l.b16 %v820
        %v921 = vunpack.c.l.b16 %v821
        %v922 = vunpack.c.l.b16 %v822
        %v923 = vunpack.c.l.b16 %v823
        %v924 = vunpack.c.l.b16 %v824
        %v925 = vunpack.c.l.b16 %v825
        %v926 = vunpack.c.l.b16 %v826
        %v927 = vunpack.c.l.b16 %v827
        %v928 = vunpack.c.l.b16 %v828
        %v929 = vunpack.c.l.b16 %v829
        %v930 = vunpack.c.l.b16 %v830
        %v931 = vpack.c.b16 %v884, %v883
        %v932 = vpack.c.b16 %v886, %v885
        %v933 = vpack.c.b16 %v888, %v887
        %v934 = vpack.c.b16 %v890, %v889
        %v935 = vpack.c.b16 %v892, %v891
        %v936 = vpack.c.b16 %v894, %v893
        %v937 = vpack.c.b16 %v896, %v895
        %v938 = vpack.c.b16 %v898, %v897
        %v939 = vpack.c.b16 %v900, %v899
        %v940 = vpack.c.b16 %v902, %v901
        %v941 = vpack.c.b16 %v904, %v903
        %v942 = vpack.c.b16 %v906, %v905
        %v943 = vpack.c.b16 %v908, %v907
        %v944 = vpack.c.b16 %v910, %v909
        %v945 = vpack.c.b16 %v912, %v911
        %v946 = vpack.c.b16 %v914, %v913
        %v947 = vpack.c.b16 %v916, %v915
        %v948 = vpack.c.b16 %v918, %v917
        %v949 = vpack.c.b16 %v920, %v919
        %v950 = vpack.c.b16 %v922, %v921
        %v951 = vpack.c.b16 %v924, %v923
        %v952 = vpack.c.b16 %v926, %v925
        %v953 = vpack.c.b16 %v928, %v927
        %v954 = vpack.c.b16 %v930, %v929
        %979 = vmatpush.bf16.msra.mxu0 %v938
        %980 = vmatpush.bf16.msra.mxu0 %v937
        %981 = vmatpush.bf16.msra.mxu0 %v936
        %982 = vmatpush.bf16.msra.mxu0 %v935
        %983 = vmatpush.bf16.msra.mxu0 %v934
        %984 = vmatpush.bf16.msra.mxu0 %v933
        %985 = vmatpush.bf16.msra.mxu0 %v932
        %986 = vmatpush.bf16.msra.mxu0 %v931
        %987 = vmatmul.bf16.gmra.mxu0 %v780
        %v988 = vpop.f32.mrf.mxu0
        %v989 = vadd.f32 %v833, %v988
        %v990 = vpop.f32.mrf.mxu0
        %991 = vdwg.mxu0
        %992 = vmatpush.bf16.msra.mxu0 %v946
        %993 = vmatpush.bf16.msra.mxu0 %v945
        %994 = vmatpush.bf16.msra.mxu0 %v944
        %995 = vmatpush.bf16.msra.mxu0 %v943
        %996 = vmatpush.bf16.msra.mxu0 %v942
        %997 = vmatpush.bf16.msra.mxu0 %v941
        %998 = vmatpush.bf16.msra.mxu0 %v940
        %999 = vmatpush.bf16.msra.mxu0 %v939
        %1000 = vmatmul.bf16.gmra.mxu0 %v781
        %v1001 = vpop.f32.mrf.mxu0
        %v1002 = vadd.f32 %v989, %v1001
        %v1003 = vpop.f32.mrf.mxu0
        %1004 = vdwg.mxu0
        %1005 = vmatpush.bf16.msra.mxu0 %v954
        %1006 = vmatpush.bf16.msra.mxu0 %v953
        %1007 = vmatpush.bf16.msra.mxu0 %v952
        %1008 = vmatpush.bf16.msra.mxu0 %v951
        %1009 = vmatpush.bf16.msra.mxu0 %v950
        %1010 = vmatpush.bf16.msra.mxu0 %v949
        %1011 = vmatpush.bf16.msra.mxu0 %v948
        %1012 = vmatpush.bf16.msra.mxu0 %v947
        %1013 = vmatmul.bf16.gmra.mxu0 %v782
        %v1014 = vpop.f32.mrf.mxu0
        %v1015 = vadd.f32 %v1002, %v1014
        %v1016 = vpop.f32.mrf.mxu0
        %1017 = vdwg.mxu0
        %v1018 = vmax.f32 %v1015, 0.0
        %v1019 = vrot.slane %v1018, 7
        %v1020 = vmul.f32 %v1019, %v442
        %v1021 = vrot.slane %v1018, 1
        %v1022 = vmul.f32 %v1021, %v445
        %v1023 = vpack.c.bf16 %v1020, %v1020
        %v1024 = vpack.c.bf16 %v1018, %v1018
        %v1025 = vpack.c.bf16 %v1022, %v1022
        %v1026 = vld [vmem:[#allocation8] sm:$0xf]
        %v1027 = vld [vmem:[#allocation8 + $0x4] sm:$0xf]
        %v1028 = vld [vmem:[#allocation8 + $0x8] sm:$0xf]
        %v1029 = vld [vmem:[#allocation8 + $0xc] sm:$0xf]
        %v1030 = vld [vmem:[#allocation8 + $0x10] sm:$0xf]
        %v1031 = vld [vmem:[#allocation8 + $0x14] sm:$0xf]
        %v1032 = vld [vmem:[#allocation8 + $0x18] sm:$0xf]
        %v1033 = vld [vmem:[#allocation8 + $0x1c] sm:$0xf]
        %v1034 = vld [vmem:[#allocation8 + $0x20] sm:$0xf]
        %v1035 = vld [vmem:[#allocation8 + $0x24] sm:$0xf]
        %v1036 = vld [vmem:[#allocation8 + $0x28] sm:$0xf]
        %v1037 = vld [vmem:[#allocation8 + $0x2c] sm:$0xf]
        %v1038 = vld [vmem:[#allocation8 + $0x30] sm:$0xf]
        %v1039 = vld [vmem:[#allocation8 + $0x34] sm:$0xf]
        %v1040 = vld [vmem:[#allocation8 + $0x38] sm:$0xf]
        %v1041 = vld [vmem:[#allocation8 + $0x3c] sm:$0xf]
        %v1042 = vld [vmem:[#allocation8 + $0x40] sm:$0xf]
        %v1043 = vld [vmem:[#allocation8 + $0x44] sm:$0xf]
        %v1044 = vld [vmem:[#allocation8 + $0x48] sm:$0xf]
        %v1045 = vld [vmem:[#allocation8 + $0x4c] sm:$0xf]
        %v1046 = vld [vmem:[#allocation8 + $0x50] sm:$0xf]
        %v1047 = vld [vmem:[#allocation8 + $0x54] sm:$0xf]
        %v1048 = vld [vmem:[#allocation8 + $0x58] sm:$0xf]
        %v1049 = vld [vmem:[#allocation8 + $0x5c] sm:$0xf]
        %v1050 = vld [vmem:[#allocation8 + $0x60] sm:$0xf]
        %v1051 = vld [vmem:[#allocation8 + $0x64] sm:$0xf]
        %v1052 = vld [vmem:[#allocation8 + $0x68] sm:$0xf]
        %v1053 = vld [vmem:[#allocation8 + $0x6c] sm:$0xf]
        %v1054 = vld [vmem:[#allocation8 + $0x70] sm:$0xf]
        %v1055 = vld [vmem:[#allocation8 + $0x74] sm:$0xf]
        %v1056 = vld [vmem:[#allocation8 + $0x78] sm:$0xf]
        %v1057 = vld [vmem:[#allocation8 + $0x7c] sm:$0xf]
        %v1058 = vld [vmem:[#allocation8 + $0x80] sm:$0xf]
        %v1059 = vld [vmem:[#allocation8 + $0x84] sm:$0xf]
        %v1060 = vld [vmem:[#allocation8 + $0x88] sm:$0xf]
        %v1061 = vld [vmem:[#allocation8 + $0x8c] sm:$0xf]
        %v1062 = vld [vmem:[#allocation8 + $0x90] sm:$0xf]
        %v1063 = vld [vmem:[#allocation8 + $0x94] sm:$0xf]
        %v1064 = vld [vmem:[#allocation8 + $0x98] sm:$0xf]
        %v1065 = vld [vmem:[#allocation8 + $0x9c] sm:$0xf]
        %v1066 = vld [vmem:[#allocation8 + $0xa0] sm:$0xf]
        %v1067 = vld [vmem:[#allocation8 + $0xa4] sm:$0xf]
        %v1068 = vld [vmem:[#allocation8 + $0xa8] sm:$0xf]
        %v1069 = vld [vmem:[#allocation8 + $0xac] sm:$0xf]
        %v1070 = vld [vmem:[#allocation8 + $0xb0] sm:$0xf]
        %v1071 = vld [vmem:[#allocation8 + $0xb4] sm:$0xf]
        %v1072 = vld [vmem:[#allocation8 + $0xb8] sm:$0xf]
        %v1073 = vld [vmem:[#allocation8 + $0xbc] sm:$0xf]
        %v1074 = vld [vmem:[%s7] sm:$0x1]
        %v1076 = vperm.slane %v1074, 0
        %v1126 = vunpack.c.l.b16 %v1026
        %v1127 = vunpack.c.l.b16 %v1027
        %v1128 = vunpack.c.l.b16 %v1028
        %v1129 = vunpack.c.l.b16 %v1029
        %v1130 = vunpack.c.l.b16 %v1030
        %v1131 = vunpack.c.l.b16 %v1031
        %v1132 = vunpack.c.l.b16 %v1032
        %v1133 = vunpack.c.l.b16 %v1033
        %v1134 = vunpack.c.l.b16 %v1034
        %v1135 = vunpack.c.l.b16 %v1035
        %v1136 = vunpack.c.l.b16 %v1036
        %v1137 = vunpack.c.l.b16 %v1037
        %v1138 = vunpack.c.l.b16 %v1038
        %v1139 = vunpack.c.l.b16 %v1039
        %v1140 = vunpack.c.l.b16 %v1040
        %v1141 = vunpack.c.l.b16 %v1041
        %v1142 = vunpack.c.l.b16 %v1042
        %v1143 = vunpack.c.l.b16 %v1043
        %v1144 = vunpack.c.l.b16 %v1044
        %v1145 = vunpack.c.l.b16 %v1045
        %v1146 = vunpack.c.l.b16 %v1046
        %v1147 = vunpack.c.l.b16 %v1047
        %v1148 = vunpack.c.l.b16 %v1048
        %v1149 = vunpack.c.l.b16 %v1049
        %v1150 = vunpack.c.l.b16 %v1050
        %v1151 = vunpack.c.l.b16 %v1051
        %v1152 = vunpack.c.l.b16 %v1052
        %v1153 = vunpack.c.l.b16 %v1053
        %v1154 = vunpack.c.l.b16 %v1054
        %v1155 = vunpack.c.l.b16 %v1055
        %v1156 = vunpack.c.l.b16 %v1056
        %v1157 = vunpack.c.l.b16 %v1057
        %v1158 = vunpack.c.l.b16 %v1058
        %v1159 = vunpack.c.l.b16 %v1059
        %v1160 = vunpack.c.l.b16 %v1060
        %v1161 = vunpack.c.l.b16 %v1061
        %v1162 = vunpack.c.l.b16 %v1062
        %v1163 = vunpack.c.l.b16 %v1063
        %v1164 = vunpack.c.l.b16 %v1064
        %v1165 = vunpack.c.l.b16 %v1065
        %v1166 = vunpack.c.l.b16 %v1066
        %v1167 = vunpack.c.l.b16 %v1067
        %v1168 = vunpack.c.l.b16 %v1068
        %v1169 = vunpack.c.l.b16 %v1069
        %v1170 = vunpack.c.l.b16 %v1070
        %v1171 = vunpack.c.l.b16 %v1071
        %v1172 = vunpack.c.l.b16 %v1072
        %v1173 = vunpack.c.l.b16 %v1073
        %v1174 = vpack.c.b16 %v1127, %v1126
        %v1175 = vpack.c.b16 %v1129, %v1128
        %v1176 = vpack.c.b16 %v1131, %v1130
        %v1177 = vpack.c.b16 %v1133, %v1132
        %v1178 = vpack.c.b16 %v1135, %v1134
        %v1179 = vpack.c.b16 %v1137, %v1136
        %v1180 = vpack.c.b16 %v1139, %v1138
        %v1181 = vpack.c.b16 %v1141, %v1140
        %v1182 = vpack.c.b16 %v1143, %v1142
        %v1183 = vpack.c.b16 %v1145, %v1144
        %v1184 = vpack.c.b16 %v1147, %v1146
        %v1185 = vpack.c.b16 %v1149, %v1148
        %v1186 = vpack.c.b16 %v1151, %v1150
        %v1187 = vpack.c.b16 %v1153, %v1152
        %v1188 = vpack.c.b16 %v1155, %v1154
        %v1189 = vpack.c.b16 %v1157, %v1156
        %v1190 = vpack.c.b16 %v1159, %v1158
        %v1191 = vpack.c.b16 %v1161, %v1160
        %v1192 = vpack.c.b16 %v1163, %v1162
        %v1193 = vpack.c.b16 %v1165, %v1164
        %v1194 = vpack.c.b16 %v1167, %v1166
        %v1195 = vpack.c.b16 %v1169, %v1168
        %v1196 = vpack.c.b16 %v1171, %v1170
        %v1197 = vpack.c.b16 %v1173, %v1172
        %1222 = vmatpush.bf16.msra.mxu0 %v1181
        %1223 = vmatpush.bf16.msra.mxu0 %v1180
        %1224 = vmatpush.bf16.msra.mxu0 %v1179
        %1225 = vmatpush.bf16.msra.mxu0 %v1178
        %1226 = vmatpush.bf16.msra.mxu0 %v1177
        %1227 = vmatpush.bf16.msra.mxu0 %v1176
        %1228 = vmatpush.bf16.msra.mxu0 %v1175
        %1229 = vmatpush.bf16.msra.mxu0 %v1174
        %1230 = vmatmul.bf16.gmra.mxu0 %v1023
        %v1231 = vpop.f32.mrf.mxu0
        %v1232 = vadd.f32 %v1076, %v1231
        %v1233 = vpop.f32.mrf.mxu0
        %1234 = vdwg.mxu0
        %1235 = vmatpush.bf16.msra.mxu0 %v1189
        %1236 = vmatpush.bf16.msra.mxu0 %v1188
        %1237 = vmatpush.bf16.msra.mxu0 %v1187
        %1238 = vmatpush.bf16.msra.mxu0 %v1186
        %1239 = vmatpush.bf16.msra.mxu0 %v1185
        %1240 = vmatpush.bf16.msra.mxu0 %v1184
        %1241 = vmatpush.bf16.msra.mxu0 %v1183
        %1242 = vmatpush.bf16.msra.mxu0 %v1182
        %1243 = vmatmul.bf16.gmra.mxu0 %v1024
        %v1244 = vpop.f32.mrf.mxu0
        %v1245 = vadd.f32 %v1232, %v1244
        %v1246 = vpop.f32.mrf.mxu0
        %1247 = vdwg.mxu0
        %1248 = vmatpush.bf16.msra.mxu0 %v1197
        %1249 = vmatpush.bf16.msra.mxu0 %v1196
        %1250 = vmatpush.bf16.msra.mxu0 %v1195
        %1251 = vmatpush.bf16.msra.mxu0 %v1194
        %1252 = vmatpush.bf16.msra.mxu0 %v1193
        %1253 = vmatpush.bf16.msra.mxu0 %v1192
        %1254 = vmatpush.bf16.msra.mxu0 %v1191
        %1255 = vmatpush.bf16.msra.mxu0 %v1190
        %1256 = vmatmul.bf16.gmra.mxu0 %v1025
        %v1257 = vpop.f32.mrf.mxu0
        %v1258 = vadd.f32 %v1245, %v1257
        %v1259 = vpop.f32.mrf.mxu0
        %1260 = vdwg.mxu0
        %v1261 = vmax.f32 %v1258, 0.0
        %v1262 = vrot.slane %v1261, 7
        %v1263 = vmul.f32 %v1262, %v442
        %v1264 = vrot.slane %v1261, 1
        %v1265 = vmul.f32 %v1264, %v445
        %v1266 = vpack.c.bf16 %v1263, %v1263
        %v1267 = vpack.c.bf16 %v1261, %v1261
        %v1268 = vpack.c.bf16 %v1265, %v1265
        %v1269 = vld [vmem:[#allocation10] sm:$0xf]
        %v1270 = vld [vmem:[#allocation10 + $0x4] sm:$0xf]
        %v1271 = vld [vmem:[#allocation10 + $0x8] sm:$0xf]
        %v1272 = vld [vmem:[#allocation10 + $0xc] sm:$0xf]
        %v1273 = vld [vmem:[#allocation10 + $0x10] sm:$0xf]
        %v1274 = vld [vmem:[#allocation10 + $0x14] sm:$0xf]
        %v1275 = vld [vmem:[#allocation10 + $0x18] sm:$0xf]
        %v1276 = vld [vmem:[#allocation10 + $0x1c] sm:$0xf]
        %v1277 = vld [vmem:[#allocation10 + $0x20] sm:$0xf]
        %v1278 = vld [vmem:[#allocation10 + $0x24] sm:$0xf]
        %v1279 = vld [vmem:[#allocation10 + $0x28] sm:$0xf]
        %v1280 = vld [vmem:[#allocation10 + $0x2c] sm:$0xf]
        %v1281 = vld [vmem:[#allocation10 + $0x30] sm:$0xf]
        %v1282 = vld [vmem:[#allocation10 + $0x34] sm:$0xf]
        %v1283 = vld [vmem:[#allocation10 + $0x38] sm:$0xf]
        %v1284 = vld [vmem:[#allocation10 + $0x3c] sm:$0xf]
        %v1285 = vld [vmem:[#allocation10 + $0x40] sm:$0xf]
        %v1286 = vld [vmem:[#allocation10 + $0x44] sm:$0xf]
        %v1287 = vld [vmem:[#allocation10 + $0x48] sm:$0xf]
        %v1288 = vld [vmem:[#allocation10 + $0x4c] sm:$0xf]
        %v1289 = vld [vmem:[#allocation10 + $0x50] sm:$0xf]
        %v1290 = vld [vmem:[#allocation10 + $0x54] sm:$0xf]
        %v1291 = vld [vmem:[#allocation10 + $0x58] sm:$0xf]
        %v1292 = vld [vmem:[#allocation10 + $0x5c] sm:$0xf]
        %v1293 = vld [vmem:[#allocation10 + $0x60] sm:$0xf]
        %v1294 = vld [vmem:[#allocation10 + $0x64] sm:$0xf]
        %v1295 = vld [vmem:[#allocation10 + $0x68] sm:$0xf]
        %v1296 = vld [vmem:[#allocation10 + $0x6c] sm:$0xf]
        %v1297 = vld [vmem:[#allocation10 + $0x70] sm:$0xf]
        %v1298 = vld [vmem:[#allocation10 + $0x74] sm:$0xf]
        %v1299 = vld [vmem:[#allocation10 + $0x78] sm:$0xf]
        %v1300 = vld [vmem:[#allocation10 + $0x7c] sm:$0xf]
        %v1301 = vld [vmem:[#allocation10 + $0x80] sm:$0xf]
        %v1302 = vld [vmem:[#allocation10 + $0x84] sm:$0xf]
        %v1303 = vld [vmem:[#allocation10 + $0x88] sm:$0xf]
        %v1304 = vld [vmem:[#allocation10 + $0x8c] sm:$0xf]
        %v1305 = vld [vmem:[#allocation10 + $0x90] sm:$0xf]
        %v1306 = vld [vmem:[#allocation10 + $0x94] sm:$0xf]
        %v1307 = vld [vmem:[#allocation10 + $0x98] sm:$0xf]
        %v1308 = vld [vmem:[#allocation10 + $0x9c] sm:$0xf]
        %v1309 = vld [vmem:[#allocation10 + $0xa0] sm:$0xf]
        %v1310 = vld [vmem:[#allocation10 + $0xa4] sm:$0xf]
        %v1311 = vld [vmem:[#allocation10 + $0xa8] sm:$0xf]
        %v1312 = vld [vmem:[#allocation10 + $0xac] sm:$0xf]
        %v1313 = vld [vmem:[#allocation10 + $0xb0] sm:$0xf]
        %v1314 = vld [vmem:[#allocation10 + $0xb4] sm:$0xf]
        %v1315 = vld [vmem:[#allocation10 + $0xb8] sm:$0xf]
        %v1316 = vld [vmem:[#allocation10 + $0xbc] sm:$0xf]
        %v1317 = vld [vmem:[%s9] sm:$0x1]
        %v1319 = vperm.slane %v1317, 0
        %v1369 = vunpack.c.l.b16 %v1269
        %v1370 = vunpack.c.l.b16 %v1270
        %v1371 = vunpack.c.l.b16 %v1271
        %v1372 = vunpack.c.l.b16 %v1272
        %v1373 = vunpack.c.l.b16 %v1273
        %v1374 = vunpack.c.l.b16 %v1274
        %v1375 = vunpack.c.l.b16 %v1275
        %v1376 = vunpack.c.l.b16 %v1276
        %v1377 = vunpack.c.l.b16 %v1277
        %v1378 = vunpack.c.l.b16 %v1278
        %v1379 = vunpack.c.l.b16 %v1279
        %v1380 = vunpack.c.l.b16 %v1280
        %v1381 = vunpack.c.l.b16 %v1281
        %v1382 = vunpack.c.l.b16 %v1282
        %v1383 = vunpack.c.l.b16 %v1283
        %v1384 = vunpack.c.l.b16 %v1284
        %v1385 = vunpack.c.l.b16 %v1285
        %v1386 = vunpack.c.l.b16 %v1286
        %v1387 = vunpack.c.l.b16 %v1287
        %v1388 = vunpack.c.l.b16 %v1288
        %v1389 = vunpack.c.l.b16 %v1289
        %v1390 = vunpack.c.l.b16 %v1290
        %v1391 = vunpack.c.l.b16 %v1291
        %v1392 = vunpack.c.l.b16 %v1292
        %v1393 = vunpack.c.l.b16 %v1293
        %v1394 = vunpack.c.l.b16 %v1294
        %v1395 = vunpack.c.l.b16 %v1295
        %v1396 = vunpack.c.l.b16 %v1296
        %v1397 = vunpack.c.l.b16 %v1297
        %v1398 = vunpack.c.l.b16 %v1298
        %v1399 = vunpack.c.l.b16 %v1299
        %v1400 = vunpack.c.l.b16 %v1300
        %v1401 = vunpack.c.l.b16 %v1301
        %v1402 = vunpack.c.l.b16 %v1302
        %v1403 = vunpack.c.l.b16 %v1303
        %v1404 = vunpack.c.l.b16 %v1304
        %v1405 = vunpack.c.l.b16 %v1305
        %v1406 = vunpack.c.l.b16 %v1306
        %v1407 = vunpack.c.l.b16 %v1307
        %v1408 = vunpack.c.l.b16 %v1308
        %v1409 = vunpack.c.l.b16 %v1309
        %v1410 = vunpack.c.l.b16 %v1310
        %v1411 = vunpack.c.l.b16 %v1311
        %v1412 = vunpack.c.l.b16 %v1312
        %v1413 = vunpack.c.l.b16 %v1313
        %v1414 = vunpack.c.l.b16 %v1314
        %v1415 = vunpack.c.l.b16 %v1315
        %v1416 = vunpack.c.l.b16 %v1316
        %v1417 = vpack.c.b16 %v1370, %v1369
        %v1418 = vpack.c.b16 %v1372, %v1371
        %v1419 = vpack.c.b16 %v1374, %v1373
        %v1420 = vpack.c.b16 %v1376, %v1375
        %v1421 = vpack.c.b16 %v1378, %v1377
        %v1422 = vpack.c.b16 %v1380, %v1379
        %v1423 = vpack.c.b16 %v1382, %v1381
        %v1424 = vpack.c.b16 %v1384, %v1383
        %v1425 = vpack.c.b16 %v1386, %v1385
        %v1426 = vpack.c.b16 %v1388, %v1387
        %v1427 = vpack.c.b16 %v1390, %v1389
        %v1428 = vpack.c.b16 %v1392, %v1391
        %v1429 = vpack.c.b16 %v1394, %v1393
        %v1430 = vpack.c.b16 %v1396, %v1395
        %v1431 = vpack.c.b16 %v1398, %v1397
        %v1432 = vpack.c.b16 %v1400, %v1399
        %v1433 = vpack.c.b16 %v1402, %v1401
        %v1434 = vpack.c.b16 %v1404, %v1403
        %v1435 = vpack.c.b16 %v1406, %v1405
        %v1436 = vpack.c.b16 %v1408, %v1407
        %v1437 = vpack.c.b16 %v1410, %v1409
        %v1438 = vpack.c.b16 %v1412, %v1411
        %v1439 = vpack.c.b16 %v1414, %v1413
        %v1440 = vpack.c.b16 %v1416, %v1415
        %1465 = vmatpush.bf16.msra.mxu0 %v1424
        %1466 = vmatpush.bf16.msra.mxu0 %v1423
        %1467 = vmatpush.bf16.msra.mxu0 %v1422
        %1468 = vmatpush.bf16.msra.mxu0 %v1421
        %1469 = vmatpush.bf16.msra.mxu0 %v1420
        %1470 = vmatpush.bf16.msra.mxu0 %v1419
        %1471 = vmatpush.bf16.msra.mxu0 %v1418
        %1472 = vmatpush.bf16.msra.mxu0 %v1417
        %1473 = vmatmul.bf16.gmra.mxu0 %v1266
        %v1474 = vpop.f32.mrf.mxu0
        %v1475 = vadd.f32 %v1319, %v1474
        %v1476 = vpop.f32.mrf.mxu0
        %1477 = vdwg.mxu0
        %1478 = vmatpush.bf16.msra.mxu0 %v1432
        %1479 = vmatpush.bf16.msra.mxu0 %v1431
        %1480 = vmatpush.bf16.msra.mxu0 %v1430
        %1481 = vmatpush.bf16.msra.mxu0 %v1429
        %1482 = vmatpush.bf16.msra.mxu0 %v1428
        %1483 = vmatpush.bf16.msra.mxu0 %v1427
        %1484 = vmatpush.bf16.msra.mxu0 %v1426
        %1485 = vmatpush.bf16.msra.mxu0 %v1425
        %1486 = vmatmul.bf16.gmra.mxu0 %v1267
        %v1487 = vpop.f32.mrf.mxu0
        %v1488 = vadd.f32 %v1475, %v1487
        %v1489 = vpop.f32.mrf.mxu0
        %1490 = vdwg.mxu0
        %1491 = vmatpush.bf16.msra.mxu0 %v1440
        %1492 = vmatpush.bf16.msra.mxu0 %v1439
        %1493 = vmatpush.bf16.msra.mxu0 %v1438
        %1494 = vmatpush.bf16.msra.mxu0 %v1437
        %1495 = vmatpush.bf16.msra.mxu0 %v1436
        %1496 = vmatpush.bf16.msra.mxu0 %v1435
        %1497 = vmatpush.bf16.msra.mxu0 %v1434
        %1498 = vmatpush.bf16.msra.mxu0 %v1433
        %1499 = vmatmul.bf16.gmra.mxu0 %v1268
        %v1500 = vpop.f32.mrf.mxu0
        %v1501 = vadd.f32 %v1488, %v1500
        %v1502 = vpop.f32.mrf.mxu0
        %1503 = vdwg.mxu0
        %v1504 = vmax.f32 %v1501, 0.0
        %1505 = vst [vmem:[%s433] sm:$0xff] %v1504
        %s1506 = sand.u32 %s250, 1
        %s1507 = scalar_lea.sflag [#allocation4], %s1506
        %s1508 = sand.u32 %s250, 1
        %s1509 = smul.addr %s1508, 8
        %s1510 = scalar_lea.vmem [#allocation11], %s1509
        // Predicated region
        $region81: #{autoencoder_cnn_forward.1} parent=59 // pred_check
          %p1511 = pneg %p260
        $region82: #{autoencoder_cnn_forward.1} parent=59 // pred_check_branch
          %1513 = sbr.rel (%p1511) target = $region84
        $region83: #{autoencoder_cnn_forward.1} parent=59 // pred_region
          %1515 = vsyncadd %s1507, 0
          %s1516 = smul.addr %s27, 8
          %s1517 = scalar_lea.hbm %s10, %s1516
          %s1519 = sshll.u32 %s1510, 4
          %s1520 = int_to_ptr.vmem [resolvable:$true] %s1519
          %s1521 = sshll.u32 %s1517, 4
          %s1522 = int_to_ptr.hbm [resolvable:$true] %s1521
          %1524 = dma.vmem_to_hbm [thread:$0]  %s1520, 128, %s1522, %s1507
        $region84: #{autoencoder_cnn_forward.1} parent=59 // pred_fallthru
          _
      $region60: #{autoencoder_cnn_forward.1} parent=5 // pred_fallthru
        _
      %p1525 = scmp.le.s32.totalorder 2, %s22
      // Predicated region
      $region85: #{autoencoder_cnn_forward.1} parent=5 // pred_check
        %p1526 = pneg %p1525
      $region86: #{autoencoder_cnn_forward.1} parent=5 // pred_check_branch
        %1528 = sbr.rel (%p1526) target = $region88
      $region87: #{autoencoder_cnn_forward.1} parent=5 // pred_region
        %s1529 = ssub.s32 %s22, 2
        // Predicated region
        $region89: #{autoencoder_cnn_forward.1} parent=87 // pred_check
          %p1530 = pneg %p266
        $region90: #{autoencoder_cnn_forward.1} parent=87 // pred_check_branch
          %1532 = sbr.rel (%p1530) target = $region92
        $region91: #{autoencoder_cnn_forward.1} parent=87 // pred_region
          %s1533 = sand.u32 %s251, 1
          %s1534 = scalar_lea.sflag [#allocation4], %s1533
          %s1535 = sand.u32 %s251, 1
          %s1536 = smul.addr %s1535, 8
          %s1537 = scalar_lea.vmem [#allocation11], %s1536
          %1539 = dma.done %s1534, 128
        $region92: #{autoencoder_cnn_forward.1} parent=87 // pred_fallthru
          _
      $region88: #{autoencoder_cnn_forward.1} parent=5 // pred_fallthru
        _
    $region6: #{autoencoder_cnn_forward.1} parent=1 // loop_footer
      %s26 = sadd.s32 1, %s22
    $region7: #{autoencoder_cnn_forward.1} parent=1 // loop_footer_branch
      %21 = sbr.rel target = $region3
    $region8: #{autoencoder_cnn_forward.1} parent=1 // loop_exit
      _
    %1540 = vsyncpa [#allocation3], 1
    %s1541 = scalar_lea.sflag [#allocation3], 1
    %1542 = vsyncpa %s1541, 1
    %1543 = vsyncpa [#allocation6], 1
    %1544 = vsyncpa [#allocation9], 1
    %1545 = vsyncpa [#allocation4], 1
    %s1546 = scalar_lea.sflag [#allocation4], 1
    %1547 = vsyncpa %s1546, 1

</llo_original>
